<compile_context>
chip_gen: v5e
topology: v5e:2x2
jax: 0.10.0
libtpu: 0.0.40
codegen_flags: <defaults>
</compile_context>

<pallas_src>
import jax
import jax.numpy as jnp
from jax.experimental import pallas as pl
from jax.experimental.pallas import tpu as pltpu


def _ddlerp_kernel(xp_ref, x_ref, xs_ref, base_ref, wa_ref, wb_ref, out_ref):
    xp = xp_ref[...].astype(jnp.float32)
    # LoRA MLP: (tile_n, C) @ (C, Hd) -> tanh -> (tile_n, Hd) @ (Hd, C)
    h = jnp.tanh(jnp.dot(xp, wa_ref[...], preferred_element_type=jnp.float32))
    y = base_ref[...] + jnp.dot(h, wb_ref[...], preferred_element_type=jnp.float32)
    # lerp(x, x_shift, y) = x + y * (x_shift - x)
    x = x_ref[...].astype(jnp.float32)
    xs = xs_ref[...].astype(jnp.float32)
    out_ref[...] = (x + y * (xs - x)).astype(out_ref.dtype)


def ddlerp_pallas(x_premixed, x, x_shifted_one_to_the_past, params, *, max_tile=512):
    """DDLerp forward.

    x_premixed / x / x_shifted_one_to_the_past: (..., C) arrays of equal shape.
    params: {'base': (C,), 'Wa': (C, Hd), 'Wb': (Hd, C)}  (Wa/Wb stored
    input-major, i.e. PyTorch's W_a.weight.T / W_b.weight.T).
    """
    assert x.shape == x_premixed.shape == x_shifted_one_to_the_past.shape
    *lead, C = x.shape
    Wa, Wb = params["Wa"], params["Wb"]
    Hd = Wa.shape[1]
    assert Wa.shape == (C, Hd) and Wb.shape == (Hd, C)

    xp2 = x_premixed.reshape(-1, C)
    x2 = x.reshape(-1, C)
    xs2 = x_shifted_one_to_the_past.reshape(-1, C)
    base2 = params["base"].reshape(1, C).astype(jnp.float32)
    N = x2.shape[0]

    # Largest power-of-two row tile (>= 8 sublanes, <= max_tile); pad rows so
    # every block is fully dense (unmasked stores) and the grid is exact.
    tn = int(min(max_tile, max(8, pl.next_power_of_2(N))))
    n_pad = int(pl.cdiv(N, tn) * tn - N)
    if n_pad:
        pad = ((0, n_pad), (0, 0))
        xp2, x2, xs2 = (jnp.pad(a, pad) for a in (xp2, x2, xs2))

    grid = (xp2.shape[0] // tn,)
    out = pl.pallas_call(
        _ddlerp_kernel,
        out_shape=jax.ShapeDtypeStruct(xp2.shape, x.dtype),
        grid_spec=pltpu.PrefetchScalarGridSpec(
            num_scalar_prefetch=0,
            grid=grid,
            in_specs=[
                pl.BlockSpec((tn, C), lambda i: (i, 0)),   # x_premixed
                pl.BlockSpec((tn, C), lambda i: (i, 0)),   # x
                pl.BlockSpec((tn, C), lambda i: (i, 0)),   # x_shift
                pl.BlockSpec((1, C), lambda i: (0, 0)),    # base (resident)
                pl.BlockSpec((C, Hd), lambda i: (0, 0)),   # Wa   (resident)
                pl.BlockSpec((Hd, C), lambda i: (0, 0)),   # Wb   (resident)
            ],
            out_specs=pl.BlockSpec((tn, C), lambda i: (i, 0)),
        ),
        compiler_params=pltpu.CompilerParams(
            dimension_semantics=("parallel",)),
    )(xp2, x2, xs2, base2, Wa, Wb)

    if n_pad:
        out = out[:N]
    return out.reshape(*lead, C)


def ddlerp_reference(x_premixed, x, x_shifted, params):
    y = params["base"] + jnp.tanh(x_premixed @ params["Wa"]) @ params["Wb"]
    return x + y * (x_shifted - x)


def _init_ddlerp_params(key, dim, dim_hidden):
    # Matches PyTorch defaults: base = zeros (DDLerp passes init_value=None),
    # nn.Linear weights ~ U(-1/sqrt(fan_in), 1/sqrt(fan_in)).
    ka, kb = jax.random.split(key)
    ba = 1.0 / (dim ** 0.5)
    bb = 1.0 / (dim_hidden ** 0.5)
    return dict(
        base=jnp.zeros((dim,), jnp.float32),
        Wa=jax.random.uniform(ka, (dim, dim_hidden), jnp.float32, -ba, ba),
        Wb=jax.random.uniform(kb, (dim_hidden, dim), jnp.float32, -bb, bb),
    )


if __name__ == "__main__":
    key = jax.random.PRNGKey(0)
    kp, k1, k2, k3, kq = jax.random.split(key, 5)

    # Main check: lane-dense C (multiple of 128), multi-step row grid.
    B, T, C, Hd = 4, 256, 128, 32
    params = _init_ddlerp_params(kp, C, Hd)
    xp = jax.random.normal(k1, (B, T, C), jnp.float32)
    x = jax.random.normal(k2, (B, T, C), jnp.float32)
    xs = jax.random.normal(k3, (B, T, C), jnp.float32)

    got = jax.jit(ddlerp_pallas)(xp, x, xs, params)
    jax.block_until_ready(got)
    ref = ddlerp_reference(xp, x, xs, params)
    assert got.shape == (B, T, C)
    assert bool(jnp.all(jnp.isfinite(got)))
    assert jnp.allclose(got, ref, atol=2e-3, rtol=2e-3), \
        float(jnp.max(jnp.abs(got - ref)))

    # Secondary check: odd row count + C < 128 (full-dim blocks + row padding).
    B2, T2, C2, Hd2 = 2, 13, 64, 32
    params2 = _init_ddlerp_params(kq, C2, Hd2)
    xp_s = jax.random.normal(k1, (B2, T2, C2), jnp.float32)
    x_s = jax.random.normal(k2, (B2, T2, C2), jnp.float32)
    xs_s = jax.random.normal(k3, (B2, T2, C2), jnp.float32)
    got_s = ddlerp_pallas(xp_s, x_s, xs_s, params2)
    jax.block_until_ready(got_s)
    ref_s = ddlerp_reference(xp_s, x_s, xs_s, params2)
    assert got_s.shape == (B2, T2, C2)
    assert jnp.allclose(got_s, ref_s, atol=2e-3, rtol=2e-3), \
        float(jnp.max(jnp.abs(got_s - ref_s)))

    print("KERNEL_OK")
</pallas_src>

<mosaic_0001>
module attributes {stable_mosaic.version = 11 : i64} {
  func.func @_ddlerp_kernel(%arg0: i32, %arg1: memref<512x128xf32, #tpu.memory_space<vmem>>, %arg2: memref<512x128xf32, #tpu.memory_space<vmem>>, %arg3: memref<512x128xf32, #tpu.memory_space<vmem>>, %arg4: memref<1x128xf32, #tpu.memory_space<vmem>>, %arg5: memref<128x32xf32, #tpu.memory_space<vmem>>, %arg6: memref<32x128xf32, #tpu.memory_space<vmem>>, %arg7: memref<512x128xf32, #tpu.memory_space<vmem>>) attributes {dimension_semantics = [#tpu.dimension_semantics<parallel>], iteration_bounds = array<i64: 2>, scalar_prefetch = 0 : i64, scratch_operands = 0 : i64, tpu.core_type = #tpu.core_type<tc>, window_params = [{transform_indices = @transform_0, window_bounds = array<i64: 512, 128>}, {transform_indices = @transform_1, window_bounds = array<i64: 512, 128>}, {transform_indices = @transform_2, window_bounds = array<i64: 512, 128>}, {pipeline_mode = #tpu.pipeline_mode<synchronous>, transform_indices = @transform_3, window_bounds = array<i64: 1, 128>}, {pipeline_mode = #tpu.pipeline_mode<synchronous>, transform_indices = @transform_4, window_bounds = array<i64: 128, 32>}, {pipeline_mode = #tpu.pipeline_mode<synchronous>, transform_indices = @transform_5, window_bounds = array<i64: 32, 128>}, {transform_indices = @transform_6, window_bounds = array<i64: 512, 128>}]} {
    %c0 = arith.constant 0 : index
    %c0_0 = arith.constant 0 : index
    %0 = vector.load %arg1[%c0, %c0_0] : memref<512x128xf32, #tpu.memory_space<vmem>>, vector<512x128xf32>
    %c0_1 = arith.constant 0 : index
    %c0_2 = arith.constant 0 : index
    %1 = vector.load %arg5[%c0_1, %c0_2] : memref<128x32xf32, #tpu.memory_space<vmem>>, vector<128x32xf32>
    %cst = arith.constant dense<0.000000e+00> : vector<512x32xf32>
    %2 = tpu.matmul %0, %1, %cst {dimension_numbers = #tpu.dot_dimension_numbers<[1], [0], [0], [1], [0, 0, 1, 1], [], []>} : vector<512x128xf32>, vector<128x32xf32>, vector<512x32xf32> -> vector<512x32xf32>
    %3 = math.tanh %2 : vector<512x32xf32>
    %c0_3 = arith.constant 0 : index
    %c0_4 = arith.constant 0 : index
    %4 = vector.load %arg4[%c0_3, %c0_4] : memref<1x128xf32, #tpu.memory_space<vmem>>, vector<1x128xf32>
    %c0_5 = arith.constant 0 : index
    %c0_6 = arith.constant 0 : index
    %5 = vector.load %arg6[%c0_5, %c0_6] : memref<32x128xf32, #tpu.memory_space<vmem>>, vector<32x128xf32>
    %cst_7 = arith.constant dense<0.000000e+00> : vector<512x128xf32>
    %6 = tpu.matmul %3, %5, %cst_7 {dimension_numbers = #tpu.dot_dimension_numbers<[1], [0], [0], [1], [0, 0, 1, 1], [], []>} : vector<512x32xf32>, vector<32x128xf32>, vector<512x128xf32> -> vector<512x128xf32>
    %7 = vector.broadcast %4 : vector<1x128xf32> to vector<512x128xf32>
    %8 = arith.addf %7, %6 : vector<512x128xf32>
    %c0_8 = arith.constant 0 : index
    %c0_9 = arith.constant 0 : index
    %9 = vector.load %arg2[%c0_8, %c0_9] : memref<512x128xf32, #tpu.memory_space<vmem>>, vector<512x128xf32>
    %c0_10 = arith.constant 0 : index
    %c0_11 = arith.constant 0 : index
    %10 = vector.load %arg3[%c0_10, %c0_11] : memref<512x128xf32, #tpu.memory_space<vmem>>, vector<512x128xf32>
    %11 = arith.subf %10, %9 : vector<512x128xf32>
    %12 = arith.mulf %8, %11 : vector<512x128xf32>
    %13 = arith.addf %9, %12 : vector<512x128xf32>
    %c0_12 = arith.constant 0 : index
    %c0_13 = arith.constant 0 : index
    %14 = vector.load %arg7[%c0_12, %c0_13] : memref<512x128xf32, #tpu.memory_space<vmem>>, vector<512x128xf32>
    tpu.vector_store %arg7[%c0_12, %c0_13], %13 {strides = array<i32>} : memref<512x128xf32, #tpu.memory_space<vmem>>, vector<512x128xf32>,
    return
  }
  func.func @transform_0(%arg0: i32) -> (i32, i32) {
    %c0_i32 = arith.constant 0 : i32
    %c0_i32_0 = arith.constant 0 : i32
    return %arg0, %c0_i32 : i32, i32
  }
  func.func @transform_1(%arg0: i32) -> (i32, i32) {
    %c0_i32 = arith.constant 0 : i32
    %c0_i32_0 = arith.constant 0 : i32
    return %arg0, %c0_i32 : i32, i32
  }
  func.func @transform_2(%arg0: i32) -> (i32, i32) {
    %c0_i32 = arith.constant 0 : i32
    %c0_i32_0 = arith.constant 0 : i32
    return %arg0, %c0_i32 : i32, i32
  }
  func.func @transform_3(%arg0: i32) -> (i32, i32) {
    %c0_i32 = arith.constant 0 : i32
    %c0_i32_0 = arith.constant 0 : i32
    %c0_i32_1 = arith.constant 0 : i32
    return %c0_i32, %c0_i32_0 : i32, i32
  }
  func.func @transform_4(%arg0: i32) -> (i32, i32) {
    %c0_i32 = arith.constant 0 : i32
    %c0_i32_0 = arith.constant 0 : i32
    %c0_i32_1 = arith.constant 0 : i32
    return %c0_i32, %c0_i32_0 : i32, i32
  }
  func.func @transform_5(%arg0: i32) -> (i32, i32) {
    %c0_i32 = arith.constant 0 : i32
    %c0_i32_0 = arith.constant 0 : i32
    %c0_i32_1 = arith.constant 0 : i32
    return %c0_i32, %c0_i32_0 : i32, i32
  }
  func.func @transform_6(%arg0: i32) -> (i32, i32) {
    %c0_i32 = arith.constant 0 : i32
    %c0_i32_0 = arith.constant 0 : i32
    return %arg0, %c0_i32 : i32, i32
  }
}

</mosaic_0001>

<llo_original>
// kernel: ddlerp_pallas.1
$region0: #{ddlerp_pallas.1}
  #allocation0 [shape = 'u32[]', space=smem, size = 0x4, offset = 0x4, fixed_abs, tag = 'smem constant byte address 0x4 - core index']
  #allocation1 [shape = 'u32[72,128]{1,0:T(1,128)}', space=vmem, size = 0x9000, scoped, tag = 'internal scratch']
  %s0 = inlined_call_operand.hbm [shape: f32[1024,128], index: 0, kind: input, shape index: {}]
  %s1 = inlined_call_operand.hbm [shape: f32[1024,128], index: 1, kind: input, shape index: {}]
  %s2 = inlined_call_operand.hbm [shape: f32[1024,128], index: 2, kind: input, shape index: {}]
  %s3 = inlined_call_operand.vmem [shape: f32[1,128], index: 3, kind: input, shape index: {}]
  %s4 = inlined_call_operand.vmem [shape: f32[128,32], index: 4, kind: input, shape index: {}]
  %s5 = inlined_call_operand.vmem [shape: f32[32,128], index: 5, kind: input, shape index: {}]
  %s6 = inlined_call_operand.hbm [shape: f32[1024,128], index: 6, kind: output, shape index: {}]
  %s7 = sld [smem:[#allocation0]]
  $region69: #{ddlerp_pallas.1} parent=0
    _
  %s9 = ssub.s32 1, %s7
  %s10 = scalar_select 0, %s9, %s7
  $region1: #{ddlerp_pallas.1} parent=0
    #allocation2 [shape = 'u8[524288]{0}', space=vmem, size = 0x80000, scoped, tag = 'input window, operand 0']
    #allocation3 [shape = 's32[2]{0}', space=sflag, size = 0x8, scoped, tag = 'scoped memory for ddlerp_pallas.1']
    #allocation4 [shape = 's32[2]{0}', space=sflag, size = 0x8, scoped, tag = 'scoped memory for ddlerp_pallas.1']
    #allocation5 [shape = 'u8[524288]{0}', space=vmem, size = 0x80000, scoped, tag = 'input window, operand 1']
    #allocation6 [shape = 's32[2]{0}', space=sflag, size = 0x8, scoped, tag = 'scoped memory for ddlerp_pallas.1']
    #allocation7 [shape = 'u8[524288]{0}', space=vmem, size = 0x80000, scoped, tag = 'input window, operand 2']
    #allocation8 [shape = 'u8[524288]{0}', space=vmem, size = 0x80000, scoped, tag = 'output window, operand 0']
    %11 = vsyncpa [#allocation3], 0
    %s12 = scalar_lea.sflag [#allocation3], 1
    %13 = vsyncpa %s12, 0
    %14 = vsyncpa [#allocation6], 0
    %s15 = scalar_lea.sflag [#allocation6], 1
    %16 = vsyncpa %s15, 0
    %17 = vsyncpa [#allocation4], 0
    %s18 = scalar_lea.sflag [#allocation4], 1
    %19 = vsyncpa %s18, 0
    loop: start=0, step=1, limit=4
    $region2: #{ddlerp_pallas.1} parent=1 // loop_pre_header
      _
    $region3: #{ddlerp_pallas.1} parent=1 // loop_header
      %s21 = sphi 0, %s25
      %p22 = scmp.ge.s32.totalorder %s21, 4
      %s31 = sphi 0, %s33
      %s34 = sphi 0, %s31
      %s35 = sphi 0, %s34
      %s51 = sphi 0, %s35
      %s57 = sphi 0, %s59
      %s60 = sphi 0, %s57
      %s61 = sphi 0, %s60
      %s77 = sphi 0, %s61
      %s83 = sphi 0, %s85
      %s86 = sphi 0, %s83
      %s87 = sphi 0, %s86
      %s103 = sphi 0, %s87
      %s107 = sphi 0, %s107
      %s109 = sphi 0, %s107
      %s110 = sphi 0, %s109
      %s124 = sphi 0, %s110
      %s128 = sphi 0, %s128
      %s130 = sphi 0, %s128
      %s131 = sphi 0, %s130
      %s145 = sphi 0, %s131
      %s149 = sphi 0, %s149
      %s151 = sphi 0, %s149
      %s152 = sphi 0, %s151
      %s166 = sphi 0, %s152
      %s172 = sphi 0, %s174
      %s175 = sphi 0, %s172
      %s176 = sphi 0, %s175
      %s192 = sphi 0, %s176
    $region4: #{ddlerp_pallas.1} parent=1 // loop_header_branch
      %24 = sbr.rel (%p22) target = $region8
    $region5: #{ddlerp_pallas.1} parent=1 // loop_body
      %s26 = ssub.s32 %s21, 1
      %s27 = ssub.s32 %s21, 2
      %s28 = sadd.s32 %s21, 1
      %s29 = ssub.s32 %s21, %s28
      %p30 = scmp.eq.s32.totalorder %s29, 0
      %s32 = sadd.s32 %s31, 1
      %s33 = scalar_select %p30, %s31, %s32
      %p36 = pneg %p30
      %p37 = scmp.eq.s32.totalorder %s21, 1
      %p38 = por %p36, %p37
      %p39 = scmp.ne.s32.totalorder %s31, %s34
      %p40 = scmp.eq.s32.totalorder %s21, 0
      %p41 = por %p39, %p40
      %p42 = scmp.ne.s32.totalorder %s31, %s34
      %p43 = scmp.eq.s32.totalorder %s26, 1
      %p44 = por %p42, %p43
      %p45 = scmp.ne.s32.totalorder %s34, %s35
      %p46 = scmp.eq.s32.totalorder %s26, 0
      %p47 = por %p45, %p46
      %p48 = scmp.ne.s32.totalorder %s34, %s35
      %p49 = scmp.eq.s32.totalorder %s27, 1
      %p50 = por %p48, %p49
      %p52 = scmp.ne.s32.totalorder %s35, %s51
      %p53 = scmp.eq.s32.totalorder %s27, 0
      %p54 = por %p52, %p53
      %s55 = ssub.s32 %s21, %s28
      %p56 = scmp.eq.s32.totalorder %s55, 0
      %s58 = sadd.s32 %s57, 1
      %s59 = scalar_select %p56, %s57, %s58
      %p62 = pneg %p56
      %p63 = scmp.eq.s32.totalorder %s21, 1
      %p64 = por %p62, %p63
      %p65 = scmp.ne.s32.totalorder %s57, %s60
      %p66 = scmp.eq.s32.totalorder %s21, 0
      %p67 = por %p65, %p66
      %p68 = scmp.ne.s32.totalorder %s57, %s60
      %p69 = scmp.eq.s32.totalorder %s26, 1
      %p70 = por %p68, %p69
      %p71 = scmp.ne.s32.totalorder %s60, %s61
      %p72 = scmp.eq.s32.totalorder %s26, 0
      %p73 = por %p71, %p72
      %p74 = scmp.ne.s32.totalorder %s60, %s61
      %p75 = scmp.eq.s32.totalorder %s27, 1
      %p76 = por %p74, %p75
      %p78 = scmp.ne.s32.totalorder %s61, %s77
      %p79 = scmp.eq.s32.totalorder %s27, 0
      %p80 = por %p78, %p79
      %s81 = ssub.s32 %s21, %s28
      %p82 = scmp.eq.s32.totalorder %s81, 0
      %s84 = sadd.s32 %s83, 1
      %s85 = scalar_select %p82, %s83, %s84
      %p88 = pneg %p82
      %p89 = scmp.eq.s32.totalorder %s21, 1
      %p90 = por %p88, %p89
      %p91 = scmp.ne.s32.totalorder %s83, %s86
      %p92 = scmp.eq.s32.totalorder %s21, 0
      %p93 = por %p91, %p92
      %p94 = scmp.ne.s32.totalorder %s83, %s86
      %p95 = scmp.eq.s32.totalorder %s26, 1
      %p96 = por %p94, %p95
      %p97 = scmp.ne.s32.totalorder %s86, %s87
      %p98 = scmp.eq.s32.totalorder %s26, 0
      %p99 = por %p97, %p98
      %p100 = scmp.ne.s32.totalorder %s86, %s87
      %p101 = scmp.eq.s32.totalorder %s27, 1
      %p102 = por %p100, %p101
      %p104 = scmp.ne.s32.totalorder %s87, %s103
      %p105 = scmp.eq.s32.totalorder %s27, 0
      %p106 = por %p104, %p105
      %s108 = sadd.s32 %s107, 1
      %p111 = scmp.eq.s32.totalorder %s21, 1
      %p112 = scmp.ne.s32.totalorder %s107, %s109
      %p113 = scmp.eq.s32.totalorder %s21, 0
      %p114 = por %p112, %p113
      %p115 = scmp.ne.s32.totalorder %s107, %s109
      %p116 = scmp.eq.s32.totalorder %s26, 1
      %p117 = por %p115, %p116
      %p118 = scmp.ne.s32.totalorder %s109, %s110
      %p119 = scmp.eq.s32.totalorder %s26, 0
      %p120 = por %p118, %p119
      %p121 = scmp.ne.s32.totalorder %s109, %s110
      %p122 = scmp.eq.s32.totalorder %s27, 1
      %p123 = por %p121, %p122
      %p125 = scmp.ne.s32.totalorder %s110, %s124
      %p126 = scmp.eq.s32.totalorder %s27, 0
      %p127 = por %p125, %p126
      %s129 = sadd.s32 %s128, 1
      %p132 = scmp.eq.s32.totalorder %s21, 1
      %p133 = scmp.ne.s32.totalorder %s128, %s130
      %p134 = scmp.eq.s32.totalorder %s21, 0
      %p135 = por %p133, %p134
      %p136 = scmp.ne.s32.totalorder %s128, %s130
      %p137 = scmp.eq.s32.totalorder %s26, 1
      %p138 = por %p136, %p137
      %p139 = scmp.ne.s32.totalorder %s130, %s131
      %p140 = scmp.eq.s32.totalorder %s26, 0
      %p141 = por %p139, %p140
      %p142 = scmp.ne.s32.totalorder %s130, %s131
      %p143 = scmp.eq.s32.totalorder %s27, 1
      %p144 = por %p142, %p143
      %p146 = scmp.ne.s32.totalorder %s131, %s145
      %p147 = scmp.eq.s32.totalorder %s27, 0
      %p148 = por %p146, %p147
      %s150 = sadd.s32 %s149, 1
      %p153 = scmp.eq.s32.totalorder %s21, 1
      %p154 = scmp.ne.s32.totalorder %s149, %s151
      %p155 = scmp.eq.s32.totalorder %s21, 0
      %p156 = por %p154, %p155
      %p157 = scmp.ne.s32.totalorder %s149, %s151
      %p158 = scmp.eq.s32.totalorder %s26, 1
      %p159 = por %p157, %p158
      %p160 = scmp.ne.s32.totalorder %s151, %s152
      %p161 = scmp.eq.s32.totalorder %s26, 0
      %p162 = por %p160, %p161
      %p163 = scmp.ne.s32.totalorder %s151, %s152
      %p164 = scmp.eq.s32.totalorder %s27, 1
      %p165 = por %p163, %p164
      %p167 = scmp.ne.s32.totalorder %s152, %s166
      %p168 = scmp.eq.s32.totalorder %s27, 0
      %p169 = por %p167, %p168
      %s170 = ssub.s32 %s21, %s28
      %p171 = scmp.eq.s32.totalorder %s170, 0
      %s173 = sadd.s32 %s172, 1
      %s174 = scalar_select %p171, %s172, %s173
      %p177 = pneg %p171
      %p178 = scmp.eq.s32.totalorder %s21, 1
      %p179 = por %p177, %p178
      %p180 = scmp.ne.s32.totalorder %s172, %s175
      %p181 = scmp.eq.s32.totalorder %s21, 0
      %p182 = por %p180, %p181
      %p183 = scmp.ne.s32.totalorder %s172, %s175
      %p184 = scmp.eq.s32.totalorder %s26, 1
      %p185 = por %p183, %p184
      %p186 = scmp.ne.s32.totalorder %s175, %s176
      %p187 = scmp.eq.s32.totalorder %s26, 0
      %p188 = por %p186, %p187
      %p189 = scmp.ne.s32.totalorder %s175, %s176
      %p190 = scmp.eq.s32.totalorder %s27, 1
      %p191 = por %p189, %p190
      %p193 = scmp.ne.s32.totalorder %s176, %s192
      %p194 = scmp.eq.s32.totalorder %s27, 0
      %p195 = por %p193, %p194
      %p196 = scmp.le.s32.totalorder 1, %s21
      %p197 = scmp.lt.s32.totalorder %s21, 3
      %p198 = pnand %p196, %p197
      %p199 = pneg %p198
      // Predicated region
      $region9: #{ddlerp_pallas.1} parent=5 // pred_check
        _
      $region10: #{ddlerp_pallas.1} parent=5 // pred_check_branch
        %201 = sbr.rel (%p198) target = $region12
      $region11: #{ddlerp_pallas.1} parent=5 // pred_region
        %s202 = ssub.s32 %s21, 1
        // Predicated region
        $region13: #{ddlerp_pallas.1} parent=11 // pred_check
          %p203 = pneg %p120
        $region14: #{ddlerp_pallas.1} parent=11 // pred_check_branch
          %205 = sbr.rel (%p203) target = $region16
        $region15: #{ddlerp_pallas.1} parent=11 // pred_region
          _
        $region16: #{ddlerp_pallas.1} parent=11 // pred_fallthru
          _
        // Predicated region
        $region17: #{ddlerp_pallas.1} parent=11 // pred_check
          %p206 = pneg %p141
        $region18: #{ddlerp_pallas.1} parent=11 // pred_check_branch
          %208 = sbr.rel (%p206) target = $region20
        $region19: #{ddlerp_pallas.1} parent=11 // pred_region
          _
        $region20: #{ddlerp_pallas.1} parent=11 // pred_fallthru
          _
        // Predicated region
        $region21: #{ddlerp_pallas.1} parent=11 // pred_check
          %p209 = pneg %p162
        $region22: #{ddlerp_pallas.1} parent=11 // pred_check_branch
          %211 = sbr.rel (%p209) target = $region24
        $region23: #{ddlerp_pallas.1} parent=11 // pred_region
          _
        $region24: #{ddlerp_pallas.1} parent=11 // pred_fallthru
          _
      $region12: #{ddlerp_pallas.1} parent=5 // pred_fallthru
        _
      %p212 = scmp.lt.s32.totalorder %s21, 2
      // Predicated region
      $region25: #{ddlerp_pallas.1} parent=5 // pred_check
        %p213 = pneg %p212
      $region26: #{ddlerp_pallas.1} parent=5 // pred_check_branch
        %215 = sbr.rel (%p213) target = $region28
      $region27: #{ddlerp_pallas.1} parent=5 // pred_region
        // Predicated region
        $region29: #{ddlerp_pallas.1} parent=27 // pred_check
          %p216 = pneg %p41
        $region30: #{ddlerp_pallas.1} parent=27 // pred_check_branch
          %218 = sbr.rel (%p216) target = $region32
        $region31: #{ddlerp_pallas.1} parent=27 // pred_region
          %s219 = sand.u32 %s31, 1
          %s220 = scalar_lea.sflag [#allocation3], %s219
          %s221 = sand.u32 %s31, 1
          %s222 = smul.addr %s221, 512
          %s223 = scalar_lea.vmem [#allocation2], %s222
          %s224 = smul.u32 64, %s21
          %226 = vsyncadd %s220, 0
          %s227 = smul.addr %s224, 8
          %s228 = scalar_lea.hbm %s0, %s227
          %s229 = sshll.u32 %s228, 4
          %s230 = int_to_ptr.hbm [resolvable:$true] %s229
          %s231 = sshll.u32 %s223, 4
          %s232 = int_to_ptr.vmem [resolvable:$true] %s231
          %237 = dma.hbm_to_vmem [thread:$0]  %s230, 8192, %s232, %s220, 128, 128, 8
        $region32: #{ddlerp_pallas.1} parent=27 // pred_fallthru
          _
        // Predicated region
        $region33: #{ddlerp_pallas.1} parent=27 // pred_check
          %p238 = pneg %p67
        $region34: #{ddlerp_pallas.1} parent=27 // pred_check_branch
          %240 = sbr.rel (%p238) target = $region36
        $region35: #{ddlerp_pallas.1} parent=27 // pred_region
          %s241 = sand.u32 %s21, 1
          %s242 = scalar_lea.sflag [#allocation6], %s241
          %s243 = sand.u32 %s57, 1
          %s244 = smul.addr %s243, 512
          %s245 = scalar_lea.vmem [#allocation5], %s244
          %s246 = smul.u32 64, %s21
          %248 = vsyncadd %s242, 0
          %s249 = smul.addr %s246, 8
          %s250 = scalar_lea.hbm %s1, %s249
          %s251 = sshll.u32 %s250, 4
          %s252 = int_to_ptr.hbm [resolvable:$true] %s251
          %s253 = sshll.u32 %s245, 4
          %s254 = int_to_ptr.vmem [resolvable:$true] %s253
          %259 = dma.hbm_to_vmem [thread:$0]  %s252, 8192, %s254, %s242, 128, 128, 8
        $region36: #{ddlerp_pallas.1} parent=27 // pred_fallthru
          _
        // Predicated region
        $region37: #{ddlerp_pallas.1} parent=27 // pred_check
          %p260 = pneg %p93
        $region38: #{ddlerp_pallas.1} parent=27 // pred_check_branch
          %262 = sbr.rel (%p260) target = $region40
        $region39: #{ddlerp_pallas.1} parent=27 // pred_region
          %s263 = sand.u32 %s21, 1
          %s264 = scalar_lea.sflag [#allocation6], %s263
          %s265 = sand.u32 %s83, 1
          %s266 = smul.addr %s265, 512
          %s267 = scalar_lea.vmem [#allocation7], %s266
          %s268 = smul.u32 64, %s21
          %270 = vsyncadd %s264, 0
          %s271 = smul.addr %s268, 8
          %s272 = scalar_lea.hbm %s2, %s271
          %s273 = sshll.u32 %s272, 4
          %s274 = int_to_ptr.hbm [resolvable:$true] %s273
          %s275 = sshll.u32 %s267, 4
          %s276 = int_to_ptr.vmem [resolvable:$true] %s275
          %281 = dma.hbm_to_vmem [thread:$0]  %s274, 8192, %s276, %s264, 128, 128, 8
        $region40: #{ddlerp_pallas.1} parent=27 // pred_fallthru
          _
      $region28: #{ddlerp_pallas.1} parent=5 // pred_fallthru
        _
      %p282 = scmp.le.s32.totalorder 1, %s21
      %p283 = scmp.lt.s32.totalorder %s21, 3
      %p284 = pnand %p282, %p283
      %p285 = pneg %p284
      // Predicated region
      $region41: #{ddlerp_pallas.1} parent=5 // pred_check
        _
      $region42: #{ddlerp_pallas.1} parent=5 // pred_check_branch
        %287 = sbr.rel (%p284) target = $region44
      $region43: #{ddlerp_pallas.1} parent=5 // pred_region
        %s288 = ssub.s32 %s21, 1
        %s289 = sand.u32 %s34, 1
        %s290 = scalar_lea.sflag [#allocation3], %s289
        %s291 = sand.u32 %s34, 1
        %s292 = smul.addr %s291, 512
        %s293 = scalar_lea.vmem [#allocation2], %s292
        // Predicated region
        $region45: #{ddlerp_pallas.1} parent=43 // pred_check
          %p294 = pneg %p47
        $region46: #{ddlerp_pallas.1} parent=43 // pred_check_branch
          %296 = sbr.rel (%p294) target = $region48
        $region47: #{ddlerp_pallas.1} parent=43 // pred_region
          %298 = dma.done %s290, 8192
        $region48: #{ddlerp_pallas.1} parent=43 // pred_fallthru
          _
        %s299 = sand.u32 %s26, 1
        %s300 = scalar_lea.sflag [#allocation6], %s299
        %s301 = sand.u32 %s60, 1
        %s302 = smul.addr %s301, 512
        %s303 = scalar_lea.vmem [#allocation5], %s302
        // Predicated region
        $region49: #{ddlerp_pallas.1} parent=43 // pred_check
          %p304 = pneg %p73
        $region50: #{ddlerp_pallas.1} parent=43 // pred_check_branch
          %306 = sbr.rel (%p304) target = $region52
        $region51: #{ddlerp_pallas.1} parent=43 // pred_region
          %308 = dma.done %s300, 8192
        $region52: #{ddlerp_pallas.1} parent=43 // pred_fallthru
          _
        %s309 = sand.u32 %s26, 1
        %s310 = scalar_lea.sflag [#allocation6], %s309
        %s311 = sand.u32 %s86, 1
        %s312 = smul.addr %s311, 512
        %s313 = scalar_lea.vmem [#allocation7], %s312
        // Predicated region
        $region53: #{ddlerp_pallas.1} parent=43 // pred_check
          %p314 = pneg %p99
        $region54: #{ddlerp_pallas.1} parent=43 // pred_check_branch
          %316 = sbr.rel (%p314) target = $region56
        $region55: #{ddlerp_pallas.1} parent=43 // pred_region
          %318 = dma.done %s310, 8192
        $region56: #{ddlerp_pallas.1} parent=43 // pred_fallthru
          _
        %s319 = sand.u32 %s34, 1
        %s320 = scalar_lea.sflag [#allocation3], %s319
        %s321 = sand.u32 %s34, 1
        %s322 = smul.addr %s321, 512
        %s323 = scalar_lea.vmem [#allocation2], %s322
        %p324 = pneg %p47
        %p325 = pneg %p44
        %s326 = sand.u32 %s26, 1
        %s327 = scalar_lea.sflag [#allocation6], %s326
        %s328 = sand.u32 %s60, 1
        %s329 = smul.addr %s328, 512
        %s330 = scalar_lea.vmem [#allocation5], %s329
        %p331 = pneg %p73
        %p332 = pneg %p70
        %s333 = sand.u32 %s26, 1
        %s334 = scalar_lea.sflag [#allocation6], %s333
        %s335 = sand.u32 %s86, 1
        %s336 = smul.addr %s335, 512
        %s337 = scalar_lea.vmem [#allocation7], %s336
        %p338 = pneg %p99
        %p339 = pneg %p96
        %p340 = pneg %p120
        %p341 = pneg %p117
        %p342 = pneg %p141
        %p343 = pneg %p138
        %p344 = pneg %p162
        %p345 = pneg %p159
        %p346 = pneg %p188
        %p347 = pneg %p185
        %s348 = sand.u32 %s175, 1
        %s349 = scalar_lea.sflag [#allocation4], %s348
        %s350 = sand.u32 %s175, 1
        %s351 = smul.addr %s350, 512
        %s352 = scalar_lea.vmem [#allocation8], %s351
        %s353 = smul.u32 64, %s26
        %s354 = smul.u32 64, %s26
        %s355 = smul.u32 64, %s26
        %s356 = smul.u32 64, %s26
        %v357 = vld [vmem:[%s293] sm:$0xff]
        %v358 = vld [vmem:[%s293 + $0x8] sm:$0xff]
        %v359 = vld [vmem:[%s293 + $0x10] sm:$0xff]
        %v360 = vld [vmem:[%s293 + $0x18] sm:$0xff]
        %v361 = vld [vmem:[%s293 + $0x20] sm:$0xff]
        %v362 = vld [vmem:[%s293 + $0x28] sm:$0xff]
        %v363 = vld [vmem:[%s293 + $0x30] sm:$0xff]
        %v364 = vld [vmem:[%s293 + $0x38] sm:$0xff]
        %v365 = vld [vmem:[%s293 + $0x40] sm:$0xff]
        %v366 = vld [vmem:[%s293 + $0x48] sm:$0xff]
        %v367 = vld [vmem:[%s293 + $0x50] sm:$0xff]
        %v368 = vld [vmem:[%s293 + $0x58] sm:$0xff]
        %v369 = vld [vmem:[%s293 + $0x60] sm:$0xff]
        %v370 = vld [vmem:[%s293 + $0x68] sm:$0xff]
        %v371 = vld [vmem:[%s293 + $0x70] sm:$0xff]
        %v372 = vld [vmem:[%s293 + $0x78] sm:$0xff]
        %v373 = vld [vmem:[%s293 + $0x80] sm:$0xff]
        %v374 = vld [vmem:[%s293 + $0x88] sm:$0xff]
        %v375 = vld [vmem:[%s293 + $0x90] sm:$0xff]
        %v376 = vld [vmem:[%s293 + $0x98] sm:$0xff]
        %v377 = vld [vmem:[%s293 + $0xa0] sm:$0xff]
        %v378 = vld [vmem:[%s293 + $0xa8] sm:$0xff]
        %v379 = vld [vmem:[%s293 + $0xb0] sm:$0xff]
        %v380 = vld [vmem:[%s293 + $0xb8] sm:$0xff]
        %v381 = vld [vmem:[%s293 + $0xc0] sm:$0xff]
        %v382 = vld [vmem:[%s293 + $0xc8] sm:$0xff]
        %v383 = vld [vmem:[%s293 + $0xd0] sm:$0xff]
        %v384 = vld [vmem:[%s293 + $0xd8] sm:$0xff]
        %v385 = vld [vmem:[%s293 + $0xe0] sm:$0xff]
        %v386 = vld [vmem:[%s293 + $0xe8] sm:$0xff]
        %v387 = vld [vmem:[%s293 + $0xf0] sm:$0xff]
        %v388 = vld [vmem:[%s293 + $0xf8] sm:$0xff]
        %v389 = vld [vmem:[%s293 + $0x100] sm:$0xff]
        %v390 = vld [vmem:[%s293 + $0x108] sm:$0xff]
        %v391 = vld [vmem:[%s293 + $0x110] sm:$0xff]
        %v392 = vld [vmem:[%s293 + $0x118] sm:$0xff]
        %v393 = vld [vmem:[%s293 + $0x120] sm:$0xff]
        %v394 = vld [vmem:[%s293 + $0x128] sm:$0xff]
        %v395 = vld [vmem:[%s293 + $0x130] sm:$0xff]
        %v396 = vld [vmem:[%s293 + $0x138] sm:$0xff]
        %v397 = vld [vmem:[%s293 + $0x140] sm:$0xff]
        %v398 = vld [vmem:[%s293 + $0x148] sm:$0xff]
        %v399 = vld [vmem:[%s293 + $0x150] sm:$0xff]
        %v400 = vld [vmem:[%s293 + $0x158] sm:$0xff]
        %v401 = vld [vmem:[%s293 + $0x160] sm:$0xff]
        %v402 = vld [vmem:[%s293 + $0x168] sm:$0xff]
        %v403 = vld [vmem:[%s293 + $0x170] sm:$0xff]
        %v404 = vld [vmem:[%s293 + $0x178] sm:$0xff]
        %v405 = vld [vmem:[%s293 + $0x180] sm:$0xff]
        %v406 = vld [vmem:[%s293 + $0x188] sm:$0xff]
        %v407 = vld [vmem:[%s293 + $0x190] sm:$0xff]
        %v408 = vld [vmem:[%s293 + $0x198] sm:$0xff]
        %v409 = vld [vmem:[%s293 + $0x1a0] sm:$0xff]
        %v410 = vld [vmem:[%s293 + $0x1a8] sm:$0xff]
        %v411 = vld [vmem:[%s293 + $0x1b0] sm:$0xff]
        %v412 = vld [vmem:[%s293 + $0x1b8] sm:$0xff]
        %v413 = vld [vmem:[%s293 + $0x1c0] sm:$0xff]
        %v414 = vld [vmem:[%s293 + $0x1c8] sm:$0xff]
        %v415 = vld [vmem:[%s293 + $0x1d0] sm:$0xff]
        %v416 = vld [vmem:[%s293 + $0x1d8] sm:$0xff]
        %v417 = vld [vmem:[%s293 + $0x1e0] sm:$0xff]
        %v418 = vld [vmem:[%s293 + $0x1e8] sm:$0xff]
        %v419 = vld [vmem:[%s293 + $0x1f0] sm:$0xff]
        %v420 = vld [vmem:[%s293 + $0x1f8] sm:$0xff]
        %v421 = vld [vmem:[%s4] sm:$0xff]
        %v422 = vld [vmem:[%s4 + $0x8] sm:$0xff]
        %v423 = vld [vmem:[%s4 + $0x10] sm:$0xff]
        %v424 = vld [vmem:[%s4 + $0x18] sm:$0xff]
        %v425 = vld [vmem:[%s4 + $0x20] sm:$0xff]
        %v426 = vld [vmem:[%s4 + $0x28] sm:$0xff]
        %v427 = vld [vmem:[%s4 + $0x30] sm:$0xff]
        %v428 = vld [vmem:[%s4 + $0x38] sm:$0xff]
        %v429 = vld [vmem:[%s4 + $0x40] sm:$0xff]
        %v430 = vld [vmem:[%s4 + $0x48] sm:$0xff]
        %v431 = vld [vmem:[%s4 + $0x50] sm:$0xff]
        %v432 = vld [vmem:[%s4 + $0x58] sm:$0xff]
        %v433 = vld [vmem:[%s4 + $0x60] sm:$0xff]
        %v434 = vld [vmem:[%s4 + $0x68] sm:$0xff]
        %v435 = vld [vmem:[%s4 + $0x70] sm:$0xff]
        %v436 = vld [vmem:[%s4 + $0x78] sm:$0xff]
        %437 = vmatpush.msra.mxu0 %v436
        %438 = vmatpush.msra.mxu0 %v435
        %439 = vmatpush.msra.mxu0 %v434
        %440 = vmatpush.msra.mxu0 %v433
        %441 = vmatpush.msra.mxu0 %v432
        %442 = vmatpush.msra.mxu0 %v431
        %443 = vmatpush.msra.mxu0 %v430
        %444 = vmatpush.msra.mxu0 %v429
        %445 = vmatpush.msra.mxu0 %v428
        %446 = vmatpush.msra.mxu0 %v427
        %447 = vmatpush.msra.mxu0 %v426
        %448 = vmatpush.msra.mxu0 %v425
        %449 = vmatpush.msra.mxu0 %v424
        %450 = vmatpush.msra.mxu0 %v423
        %451 = vmatpush.msra.mxu0 %v422
        %452 = vmatpush.msra.mxu0 %v421
        %453 = vmatmul.f32.gmra.mxu0 %v357
        %v454 = vpop.f32.mrf.mxu0
        %v455 = vadd.f32 0.0, %v454
        %456 = vmatmul.f32.gmra.mxu0 %v358
        %v457 = vpop.f32.mrf.mxu0
        %v458 = vadd.f32 0.0, %v457
        %459 = vmatmul.f32.gmra.mxu0 %v359
        %v460 = vpop.f32.mrf.mxu0
        %v461 = vadd.f32 0.0, %v460
        %462 = vmatmul.f32.gmra.mxu0 %v360
        %v463 = vpop.f32.mrf.mxu0
        %v464 = vadd.f32 0.0, %v463
        %465 = vmatmul.f32.gmra.mxu0 %v361
        %v466 = vpop.f32.mrf.mxu0
        %v467 = vadd.f32 0.0, %v466
        %468 = vmatmul.f32.gmra.mxu0 %v362
        %v469 = vpop.f32.mrf.mxu0
        %v470 = vadd.f32 0.0, %v469
        %471 = vmatmul.f32.gmra.mxu0 %v363
        %v472 = vpop.f32.mrf.mxu0
        %v473 = vadd.f32 0.0, %v472
        %474 = vmatmul.f32.gmra.mxu0 %v364
        %v475 = vpop.f32.mrf.mxu0
        %v476 = vadd.f32 0.0, %v475
        %477 = vmatmul.f32.gmra.mxu0 %v365
        %v478 = vpop.f32.mrf.mxu0
        %v479 = vadd.f32 0.0, %v478
        %480 = vmatmul.f32.gmra.mxu0 %v366
        %v481 = vpop.f32.mrf.mxu0
        %v482 = vadd.f32 0.0, %v481
        %483 = vmatmul.f32.gmra.mxu0 %v367
        %v484 = vpop.f32.mrf.mxu0
        %v485 = vadd.f32 0.0, %v484
        %486 = vmatmul.f32.gmra.mxu0 %v368
        %v487 = vpop.f32.mrf.mxu0
        %v488 = vadd.f32 0.0, %v487
        %489 = vmatmul.f32.gmra.mxu0 %v369
        %v490 = vpop.f32.mrf.mxu0
        %v491 = vadd.f32 0.0, %v490
        %492 = vmatmul.f32.gmra.mxu0 %v370
        %v493 = vpop.f32.mrf.mxu0
        %v494 = vadd.f32 0.0, %v493
        %495 = vmatmul.f32.gmra.mxu0 %v371
        %v496 = vpop.f32.mrf.mxu0
        %v497 = vadd.f32 0.0, %v496
        %498 = vmatmul.f32.gmra.mxu0 %v372
        %v499 = vpop.f32.mrf.mxu0
        %v500 = vadd.f32 0.0, %v499
        %501 = vmatmul.f32.gmra.mxu0 %v373
        %v502 = vpop.f32.mrf.mxu0
        %v503 = vadd.f32 0.0, %v502
        %504 = vmatmul.f32.gmra.mxu0 %v374
        %v505 = vpop.f32.mrf.mxu0
        %v506 = vadd.f32 0.0, %v505
        %507 = vmatmul.f32.gmra.mxu0 %v375
        %v508 = vpop.f32.mrf.mxu0
        %v509 = vadd.f32 0.0, %v508
        %510 = vmatmul.f32.gmra.mxu0 %v376
        %v511 = vpop.f32.mrf.mxu0
        %v512 = vadd.f32 0.0, %v511
        %513 = vmatmul.f32.gmra.mxu0 %v377
        %v514 = vpop.f32.mrf.mxu0
        %v515 = vadd.f32 0.0, %v514
        %516 = vmatmul.f32.gmra.mxu0 %v378
        %v517 = vpop.f32.mrf.mxu0
        %v518 = vadd.f32 0.0, %v517
        %519 = vmatmul.f32.gmra.mxu0 %v379
        %v520 = vpop.f32.mrf.mxu0
        %v521 = vadd.f32 0.0, %v520
        %522 = vmatmul.f32.gmra.mxu0 %v380
        %v523 = vpop.f32.mrf.mxu0
        %v524 = vadd.f32 0.0, %v523
        %525 = vmatmul.f32.gmra.mxu0 %v381
        %v526 = vpop.f32.mrf.mxu0
        %v527 = vadd.f32 0.0, %v526
        %528 = vmatmul.f32.gmra.mxu0 %v382
        %v529 = vpop.f32.mrf.mxu0
        %v530 = vadd.f32 0.0, %v529
        %531 = vmatmul.f32.gmra.mxu0 %v383
        %v532 = vpop.f32.mrf.mxu0
        %v533 = vadd.f32 0.0, %v532
        %534 = vmatmul.f32.gmra.mxu0 %v384
        %v535 = vpop.f32.mrf.mxu0
        %v536 = vadd.f32 0.0, %v535
        %537 = vmatmul.f32.gmra.mxu0 %v385
        %v538 = vpop.f32.mrf.mxu0
        %v539 = vadd.f32 0.0, %v538
        %540 = vmatmul.f32.gmra.mxu0 %v386
        %v541 = vpop.f32.mrf.mxu0
        %v542 = vadd.f32 0.0, %v541
        %543 = vmatmul.f32.gmra.mxu0 %v387
        %v544 = vpop.f32.mrf.mxu0
        %v545 = vadd.f32 0.0, %v544
        %546 = vmatmul.f32.gmra.mxu0 %v388
        %v547 = vpop.f32.mrf.mxu0
        %v548 = vadd.f32 0.0, %v547
        %549 = vmatmul.f32.gmra.mxu0 %v389
        %v550 = vpop.f32.mrf.mxu0
        %v551 = vadd.f32 0.0, %v550
        %552 = vmatmul.f32.gmra.mxu0 %v390
        %v553 = vpop.f32.mrf.mxu0
        %v554 = vadd.f32 0.0, %v553
        %555 = vmatmul.f32.gmra.mxu0 %v391
        %v556 = vpop.f32.mrf.mxu0
        %v557 = vadd.f32 0.0, %v556
        %558 = vmatmul.f32.gmra.mxu0 %v392
        %v559 = vpop.f32.mrf.mxu0
        %v560 = vadd.f32 0.0, %v559
        %561 = vmatmul.f32.gmra.mxu0 %v393
        %v562 = vpop.f32.mrf.mxu0
        %v563 = vadd.f32 0.0, %v562
        %564 = vmatmul.f32.gmra.mxu0 %v394
        %v565 = vpop.f32.mrf.mxu0
        %v566 = vadd.f32 0.0, %v565
        %567 = vmatmul.f32.gmra.mxu0 %v395
        %v568 = vpop.f32.mrf.mxu0
        %v569 = vadd.f32 0.0, %v568
        %570 = vmatmul.f32.gmra.mxu0 %v396
        %v571 = vpop.f32.mrf.mxu0
        %v572 = vadd.f32 0.0, %v571
        %573 = vmatmul.f32.gmra.mxu0 %v397
        %v574 = vpop.f32.mrf.mxu0
        %v575 = vadd.f32 0.0, %v574
        %576 = vmatmul.f32.gmra.mxu0 %v398
        %v577 = vpop.f32.mrf.mxu0
        %v578 = vadd.f32 0.0, %v577
        %579 = vmatmul.f32.gmra.mxu0 %v399
        %v580 = vpop.f32.mrf.mxu0
        %v581 = vadd.f32 0.0, %v580
        %582 = vmatmul.f32.gmra.mxu0 %v400
        %v583 = vpop.f32.mrf.mxu0
        %v584 = vadd.f32 0.0, %v583
        %585 = vmatmul.f32.gmra.mxu0 %v401
        %v586 = vpop.f32.mrf.mxu0
        %v587 = vadd.f32 0.0, %v586
        %588 = vmatmul.f32.gmra.mxu0 %v402
        %v589 = vpop.f32.mrf.mxu0
        %v590 = vadd.f32 0.0, %v589
        %591 = vmatmul.f32.gmra.mxu0 %v403
        %v592 = vpop.f32.mrf.mxu0
        %v593 = vadd.f32 0.0, %v592
        %594 = vmatmul.f32.gmra.mxu0 %v404
        %v595 = vpop.f32.mrf.mxu0
        %v596 = vadd.f32 0.0, %v595
        %597 = vmatmul.f32.gmra.mxu0 %v405
        %v598 = vpop.f32.mrf.mxu0
        %v599 = vadd.f32 0.0, %v598
        %600 = vmatmul.f32.gmra.mxu0 %v406
        %v601 = vpop.f32.mrf.mxu0
        %v602 = vadd.f32 0.0, %v601
        %603 = vmatmul.f32.gmra.mxu0 %v407
        %v604 = vpop.f32.mrf.mxu0
        %v605 = vadd.f32 0.0, %v604
        %606 = vmatmul.f32.gmra.mxu0 %v408
        %v607 = vpop.f32.mrf.mxu0
        %v608 = vadd.f32 0.0, %v607
        %609 = vmatmul.f32.gmra.mxu0 %v409
        %v610 = vpop.f32.mrf.mxu0
        %v611 = vadd.f32 0.0, %v610
        %612 = vmatmul.f32.gmra.mxu0 %v410
        %v613 = vpop.f32.mrf.mxu0
        %v614 = vadd.f32 0.0, %v613
        %615 = vmatmul.f32.gmra.mxu0 %v411
        %v616 = vpop.f32.mrf.mxu0
        %v617 = vadd.f32 0.0, %v616
        %618 = vmatmul.f32.gmra.mxu0 %v412
        %v619 = vpop.f32.mrf.mxu0
        %v620 = vadd.f32 0.0, %v619
        %621 = vmatmul.f32.gmra.mxu0 %v413
        %v622 = vpop.f32.mrf.mxu0
        %v623 = vadd.f32 0.0, %v622
        %624 = vmatmul.f32.gmra.mxu0 %v414
        %v625 = vpop.f32.mrf.mxu0
        %v626 = vadd.f32 0.0, %v625
        %627 = vmatmul.f32.gmra.mxu0 %v415
        %v628 = vpop.f32.mrf.mxu0
        %v629 = vadd.f32 0.0, %v628
        %630 = vmatmul.f32.gmra.mxu0 %v416
        %v631 = vpop.f32.mrf.mxu0
        %v632 = vadd.f32 0.0, %v631
        %633 = vmatmul.f32.gmra.mxu0 %v417
        %v634 = vpop.f32.mrf.mxu0
        %v635 = vadd.f32 0.0, %v634
        %636 = vmatmul.f32.gmra.mxu0 %v418
        %v637 = vpop.f32.mrf.mxu0
        %v638 = vadd.f32 0.0, %v637
        %639 = vmatmul.f32.gmra.mxu0 %v419
        %v640 = vpop.f32.mrf.mxu0
        %v641 = vadd.f32 0.0, %v640
        %642 = vmatmul.f32.gmra.mxu0 %v420
        %v643 = vpop.f32.mrf.mxu0
        %v644 = vadd.f32 0.0, %v643
        %645 = vdwg.mxu0
        %v646 = vtanh.pop %v455
        %v647 = vtanh.pop %v458
        %v648 = vtanh.pop %v461
        %v649 = vtanh.pop %v464
        %v650 = vtanh.pop %v467
        %v651 = vtanh.pop %v470
        %v652 = vtanh.pop %v473
        %v653 = vtanh.pop %v476
        %v654 = vtanh.pop %v479
        %v655 = vtanh.pop %v482
        %v656 = vtanh.pop %v485
        %v657 = vtanh.pop %v488
        %v658 = vtanh.pop %v491
        %v659 = vtanh.pop %v494
        %v660 = vtanh.pop %v497
        %v661 = vtanh.pop %v500
        %v662 = vtanh.pop %v503
        %v663 = vtanh.pop %v506
        %v664 = vtanh.pop %v509
        %v665 = vtanh.pop %v512
        %v666 = vtanh.pop %v515
        %v667 = vtanh.pop %v518
        %v668 = vtanh.pop %v521
        %v669 = vtanh.pop %v524
        %v670 = vtanh.pop %v527
        %v671 = vtanh.pop %v530
        %v672 = vtanh.pop %v533
        %v673 = vtanh.pop %v536
        %v674 = vtanh.pop %v539
        %v675 = vtanh.pop %v542
        %v676 = vtanh.pop %v545
        %v677 = vtanh.pop %v548
        %v678 = vtanh.pop %v551
        %v679 = vtanh.pop %v554
        %v680 = vtanh.pop %v557
        %v681 = vtanh.pop %v560
        %v682 = vtanh.pop %v563
        %v683 = vtanh.pop %v566
        %v684 = vtanh.pop %v569
        %v685 = vtanh.pop %v572
        %v686 = vtanh.pop %v575
        %v687 = vtanh.pop %v578
        %v688 = vtanh.pop %v581
        %v689 = vtanh.pop %v584
        %v690 = vtanh.pop %v587
        %v691 = vtanh.pop %v590
        %v692 = vtanh.pop %v593
        %v693 = vtanh.pop %v596
        %v694 = vtanh.pop %v599
        %v695 = vtanh.pop %v602
        %v696 = vtanh.pop %v605
        %v697 = vtanh.pop %v608
        %v698 = vtanh.pop %v611
        %v699 = vtanh.pop %v614
        %v700 = vtanh.pop %v617
        %v701 = vtanh.pop %v620
        %v702 = vtanh.pop %v623
        %v703 = vtanh.pop %v626
        %v704 = vtanh.pop %v629
        %v705 = vtanh.pop %v632
        %v706 = vtanh.pop %v635
        %v707 = vtanh.pop %v638
        %v708 = vtanh.pop %v641
        %v709 = vtanh.pop %v644
        %v710 = vld [vmem:[%s3] sm:$0x1]
        %v711 = vld [vmem:[%s5] sm:$0xff]
        %v712 = vld [vmem:[%s5 + $0x8] sm:$0xff]
        %v713 = vld [vmem:[%s5 + $0x10] sm:$0xff]
        %v714 = vld [vmem:[%s5 + $0x18] sm:$0xff]
        %vm715 = vcmask 261120
        %v717 = vsel %vm715, %v646, 0
        %v720 = vsel %vm715, %v647, 0
        %v723 = vsel %vm715, %v648, 0
        %v726 = vsel %vm715, %v649, 0
        %v729 = vsel %vm715, %v650, 0
        %v732 = vsel %vm715, %v651, 0
        %v735 = vsel %vm715, %v652, 0
        %v738 = vsel %vm715, %v653, 0
        %v741 = vsel %vm715, %v654, 0
        %v744 = vsel %vm715, %v655, 0
        %v747 = vsel %vm715, %v656, 0
        %v750 = vsel %vm715, %v657, 0
        %v753 = vsel %vm715, %v658, 0
        %v756 = vsel %vm715, %v659, 0
        %v759 = vsel %vm715, %v660, 0
        %v762 = vsel %vm715, %v661, 0
        %v765 = vsel %vm715, %v662, 0
        %v768 = vsel %vm715, %v663, 0
        %v771 = vsel %vm715, %v664, 0
        %v774 = vsel %vm715, %v665, 0
        %v777 = vsel %vm715, %v666, 0
        %v780 = vsel %vm715, %v667, 0
        %v783 = vsel %vm715, %v668, 0
        %v786 = vsel %vm715, %v669, 0
        %v789 = vsel %vm715, %v670, 0
        %v792 = vsel %vm715, %v671, 0
        %v795 = vsel %vm715, %v672, 0
        %v798 = vsel %vm715, %v673, 0
        %v801 = vsel %vm715, %v674, 0
        %v804 = vsel %vm715, %v675, 0
        %v807 = vsel %vm715, %v676, 0
        %v810 = vsel %vm715, %v677, 0
        %v813 = vsel %vm715, %v678, 0
        %v816 = vsel %vm715, %v679, 0
        %v819 = vsel %vm715, %v680, 0
        %v822 = vsel %vm715, %v681, 0
        %v825 = vsel %vm715, %v682, 0
        %v828 = vsel %vm715, %v683, 0
        %v831 = vsel %vm715, %v684, 0
        %v834 = vsel %vm715, %v685, 0
        %v837 = vsel %vm715, %v686, 0
        %v840 = vsel %vm715, %v687, 0
        %v843 = vsel %vm715, %v688, 0
        %v846 = vsel %vm715, %v689, 0
        %v849 = vsel %vm715, %v690, 0
        %v852 = vsel %vm715, %v691, 0
        %v855 = vsel %vm715, %v692, 0
        %v858 = vsel %vm715, %v693, 0
        %v861 = vsel %vm715, %v694, 0
        %v864 = vsel %vm715, %v695, 0
        %v867 = vsel %vm715, %v696, 0
        %v870 = vsel %vm715, %v697, 0
        %v873 = vsel %vm715, %v698, 0
        %v876 = vsel %vm715, %v699, 0
        %v879 = vsel %vm715, %v700, 0
        %v882 = vsel %vm715, %v701, 0
        %v885 = vsel %vm715, %v702, 0
        %v888 = vsel %vm715, %v703, 0
        %v891 = vsel %vm715, %v704, 0
        %v894 = vsel %vm715, %v705, 0
        %v897 = vsel %vm715, %v706, 0
        %v900 = vsel %vm715, %v707, 0
        %v903 = vsel %vm715, %v708, 0
        %v906 = vsel %vm715, %v709, 0
        %908 = vmatpush.msra.mxu0 0.0
        %909 = vmatpush.msra.mxu0 0.0
        %910 = vmatpush.msra.mxu0 0.0
        %911 = vmatpush.msra.mxu0 0.0
        %912 = vmatpush.msra.mxu0 0.0
        %913 = vmatpush.msra.mxu0 0.0
        %914 = vmatpush.msra.mxu0 0.0
        %915 = vmatpush.msra.mxu0 0.0
        %916 = vmatpush.msra.mxu0 0.0
        %917 = vmatpush.msra.mxu0 0.0
        %918 = vmatpush.msra.mxu0 0.0
        %919 = vmatpush.msra.mxu0 0.0
        %920 = vmatpush.msra.mxu0 %v714
        %921 = vmatpush.msra.mxu0 %v713
        %922 = vmatpush.msra.mxu0 %v712
        %923 = vmatpush.msra.mxu0 %v711
        %924 = vmatmul.f32.gmra.mxu0 %v717
        %v925 = vpop.f32.mrf.mxu0
        %v926 = vadd.f32 0.0, %v925
        %927 = vmatmul.f32.gmra.mxu0 %v720
        %v928 = vpop.f32.mrf.mxu0
        %v929 = vadd.f32 0.0, %v928
        %930 = vmatmul.f32.gmra.mxu0 %v723
        %v931 = vpop.f32.mrf.mxu0
        %v932 = vadd.f32 0.0, %v931
        %933 = vmatmul.f32.gmra.mxu0 %v726
        %v934 = vpop.f32.mrf.mxu0
        %v935 = vadd.f32 0.0, %v934
        %936 = vmatmul.f32.gmra.mxu0 %v729
        %v937 = vpop.f32.mrf.mxu0
        %v938 = vadd.f32 0.0, %v937
        %939 = vmatmul.f32.gmra.mxu0 %v732
        %v940 = vpop.f32.mrf.mxu0
        %v941 = vadd.f32 0.0, %v940
        %942 = vmatmul.f32.gmra.mxu0 %v735
        %v943 = vpop.f32.mrf.mxu0
        %v944 = vadd.f32 0.0, %v943
        %945 = vmatmul.f32.gmra.mxu0 %v738
        %v946 = vpop.f32.mrf.mxu0
        %v947 = vadd.f32 0.0, %v946
        %948 = vmatmul.f32.gmra.mxu0 %v741
        %v949 = vpop.f32.mrf.mxu0
        %v950 = vadd.f32 0.0, %v949
        %951 = vmatmul.f32.gmra.mxu0 %v744
        %v952 = vpop.f32.mrf.mxu0
        %v953 = vadd.f32 0.0, %v952
        %954 = vmatmul.f32.gmra.mxu0 %v747
        %v955 = vpop.f32.mrf.mxu0
        %v956 = vadd.f32 0.0, %v955
        %957 = vmatmul.f32.gmra.mxu0 %v750
        %v958 = vpop.f32.mrf.mxu0
        %v959 = vadd.f32 0.0, %v958
        %960 = vmatmul.f32.gmra.mxu0 %v753
        %v961 = vpop.f32.mrf.mxu0
        %v962 = vadd.f32 0.0, %v961
        %963 = vmatmul.f32.gmra.mxu0 %v756
        %v964 = vpop.f32.mrf.mxu0
        %v965 = vadd.f32 0.0, %v964
        %966 = vmatmul.f32.gmra.mxu0 %v759
        %v967 = vpop.f32.mrf.mxu0
        %v968 = vadd.f32 0.0, %v967
        %969 = vmatmul.f32.gmra.mxu0 %v762
        %v970 = vpop.f32.mrf.mxu0
        %v971 = vadd.f32 0.0, %v970
        %972 = vmatmul.f32.gmra.mxu0 %v765
        %v973 = vpop.f32.mrf.mxu0
        %v974 = vadd.f32 0.0, %v973
        %975 = vmatmul.f32.gmra.mxu0 %v768
        %v976 = vpop.f32.mrf.mxu0
        %v977 = vadd.f32 0.0, %v976
        %978 = vmatmul.f32.gmra.mxu0 %v771
        %v979 = vpop.f32.mrf.mxu0
        %v980 = vadd.f32 0.0, %v979
        %981 = vmatmul.f32.gmra.mxu0 %v774
        %v982 = vpop.f32.mrf.mxu0
        %v983 = vadd.f32 0.0, %v982
        %984 = vmatmul.f32.gmra.mxu0 %v777
        %v985 = vpop.f32.mrf.mxu0
        %v986 = vadd.f32 0.0, %v985
        %987 = vmatmul.f32.gmra.mxu0 %v780
        %v988 = vpop.f32.mrf.mxu0
        %v989 = vadd.f32 0.0, %v988
        %990 = vmatmul.f32.gmra.mxu0 %v783
        %v991 = vpop.f32.mrf.mxu0
        %v992 = vadd.f32 0.0, %v991
        %993 = vmatmul.f32.gmra.mxu0 %v786
        %v994 = vpop.f32.mrf.mxu0
        %v995 = vadd.f32 0.0, %v994
        %996 = vmatmul.f32.gmra.mxu0 %v789
        %v997 = vpop.f32.mrf.mxu0
        %v998 = vadd.f32 0.0, %v997
        %999 = vmatmul.f32.gmra.mxu0 %v792
        %v1000 = vpop.f32.mrf.mxu0
        %v1001 = vadd.f32 0.0, %v1000
        %1002 = vmatmul.f32.gmra.mxu0 %v795
        %v1003 = vpop.f32.mrf.mxu0
        %v1004 = vadd.f32 0.0, %v1003
        %1005 = vmatmul.f32.gmra.mxu0 %v798
        %v1006 = vpop.f32.mrf.mxu0
        %v1007 = vadd.f32 0.0, %v1006
        %1008 = vmatmul.f32.gmra.mxu0 %v801
        %v1009 = vpop.f32.mrf.mxu0
        %v1010 = vadd.f32 0.0, %v1009
        %1011 = vmatmul.f32.gmra.mxu0 %v804
        %v1012 = vpop.f32.mrf.mxu0
        %v1013 = vadd.f32 0.0, %v1012
        %1014 = vmatmul.f32.gmra.mxu0 %v807
        %v1015 = vpop.f32.mrf.mxu0
        %v1016 = vadd.f32 0.0, %v1015
        %1017 = vmatmul.f32.gmra.mxu0 %v810
        %v1018 = vpop.f32.mrf.mxu0
        %v1019 = vadd.f32 0.0, %v1018
        %1020 = vmatmul.f32.gmra.mxu0 %v813
        %v1021 = vpop.f32.mrf.mxu0
        %v1022 = vadd.f32 0.0, %v1021
        %1023 = vmatmul.f32.gmra.mxu0 %v816
        %v1024 = vpop.f32.mrf.mxu0
        %v1025 = vadd.f32 0.0, %v1024
        %1026 = vmatmul.f32.gmra.mxu0 %v819
        %v1027 = vpop.f32.mrf.mxu0
        %v1028 = vadd.f32 0.0, %v1027
        %1029 = vmatmul.f32.gmra.mxu0 %v822
        %v1030 = vpop.f32.mrf.mxu0
        %v1031 = vadd.f32 0.0, %v1030
        %1032 = vmatmul.f32.gmra.mxu0 %v825
        %v1033 = vpop.f32.mrf.mxu0
        %v1034 = vadd.f32 0.0, %v1033
        %1035 = vmatmul.f32.gmra.mxu0 %v828
        %v1036 = vpop.f32.mrf.mxu0
        %v1037 = vadd.f32 0.0, %v1036
        %1038 = vmatmul.f32.gmra.mxu0 %v831
        %v1039 = vpop.f32.mrf.mxu0
        %v1040 = vadd.f32 0.0, %v1039
        %1041 = vmatmul.f32.gmra.mxu0 %v834
        %v1042 = vpop.f32.mrf.mxu0
        %v1043 = vadd.f32 0.0, %v1042
        %1044 = vmatmul.f32.gmra.mxu0 %v837
        %v1045 = vpop.f32.mrf.mxu0
        %v1046 = vadd.f32 0.0, %v1045
        %1047 = vmatmul.f32.gmra.mxu0 %v840
        %v1048 = vpop.f32.mrf.mxu0
        %v1049 = vadd.f32 0.0, %v1048
        %1050 = vmatmul.f32.gmra.mxu0 %v843
        %v1051 = vpop.f32.mrf.mxu0
        %v1052 = vadd.f32 0.0, %v1051
        %1053 = vmatmul.f32.gmra.mxu0 %v846
        %v1054 = vpop.f32.mrf.mxu0
        %v1055 = vadd.f32 0.0, %v1054
        %1056 = vmatmul.f32.gmra.mxu0 %v849
        %v1057 = vpop.f32.mrf.mxu0
        %v1058 = vadd.f32 0.0, %v1057
        %1059 = vmatmul.f32.gmra.mxu0 %v852
        %v1060 = vpop.f32.mrf.mxu0
        %v1061 = vadd.f32 0.0, %v1060
        %1062 = vmatmul.f32.gmra.mxu0 %v855
        %v1063 = vpop.f32.mrf.mxu0
        %v1064 = vadd.f32 0.0, %v1063
        %1065 = vmatmul.f32.gmra.mxu0 %v858
        %v1066 = vpop.f32.mrf.mxu0
        %v1067 = vadd.f32 0.0, %v1066
        %1068 = vmatmul.f32.gmra.mxu0 %v861
        %v1069 = vpop.f32.mrf.mxu0
        %v1070 = vadd.f32 0.0, %v1069
        %1071 = vmatmul.f32.gmra.mxu0 %v864
        %v1072 = vpop.f32.mrf.mxu0
        %v1073 = vadd.f32 0.0, %v1072
        %1074 = vmatmul.f32.gmra.mxu0 %v867
        %v1075 = vpop.f32.mrf.mxu0
        %v1076 = vadd.f32 0.0, %v1075
        %1077 = vmatmul.f32.gmra.mxu0 %v870
        %v1078 = vpop.f32.mrf.mxu0
        %v1079 = vadd.f32 0.0, %v1078
        %1080 = vmatmul.f32.gmra.mxu0 %v873
        %v1081 = vpop.f32.mrf.mxu0
        %v1082 = vadd.f32 0.0, %v1081
        %1083 = vmatmul.f32.gmra.mxu0 %v876
        %v1084 = vpop.f32.mrf.mxu0
        %v1085 = vadd.f32 0.0, %v1084
        %1086 = vmatmul.f32.gmra.mxu0 %v879
        %v1087 = vpop.f32.mrf.mxu0
        %v1088 = vadd.f32 0.0, %v1087
        %1089 = vmatmul.f32.gmra.mxu0 %v882
        %v1090 = vpop.f32.mrf.mxu0
        %v1091 = vadd.f32 0.0, %v1090
        %1092 = vmatmul.f32.gmra.mxu0 %v885
        %v1093 = vpop.f32.mrf.mxu0
        %v1094 = vadd.f32 0.0, %v1093
        %1095 = vmatmul.f32.gmra.mxu0 %v888
        %v1096 = vpop.f32.mrf.mxu0
        %v1097 = vadd.f32 0.0, %v1096
        %1098 = vmatmul.f32.gmra.mxu0 %v891
        %v1099 = vpop.f32.mrf.mxu0
        %v1100 = vadd.f32 0.0, %v1099
        %1101 = vmatmul.f32.gmra.mxu0 %v894
        %v1102 = vpop.f32.mrf.mxu0
        %v1103 = vadd.f32 0.0, %v1102
        %1104 = vmatmul.f32.gmra.mxu0 %v897
        %v1105 = vpop.f32.mrf.mxu0
        %v1106 = vadd.f32 0.0, %v1105
        %1107 = vmatmul.f32.gmra.mxu0 %v900
        %v1108 = vpop.f32.mrf.mxu0
        %v1109 = vadd.f32 0.0, %v1108
        %1110 = vmatmul.f32.gmra.mxu0 %v903
        %v1111 = vpop.f32.mrf.mxu0
        %v1112 = vadd.f32 0.0, %v1111
        %1113 = vmatmul.f32.gmra.mxu0 %v906
        %v1114 = vpop.f32.mrf.mxu0
        %v1115 = vadd.f32 0.0, %v1114
        %1116 = vdwg.mxu0
        %v1118 = vperm.slane %v710, 0
        %v1120 = vadd.f32 %v1118, %v926
        %v1121 = vadd.f32 %v1118, %v929
        %v1122 = vadd.f32 %v1118, %v932
        %v1123 = vadd.f32 %v1118, %v935
        %v1124 = vadd.f32 %v1118, %v938
        %v1125 = vadd.f32 %v1118, %v941
        %v1126 = vadd.f32 %v1118, %v944
        %v1127 = vadd.f32 %v1118, %v947
        %v1128 = vadd.f32 %v1118, %v950
        %v1129 = vadd.f32 %v1118, %v953
        %v1130 = vadd.f32 %v1118, %v956
        %v1131 = vadd.f32 %v1118, %v959
        %v1132 = vadd.f32 %v1118, %v962
        %v1133 = vadd.f32 %v1118, %v965
        %v1134 = vadd.f32 %v1118, %v968
        %v1135 = vadd.f32 %v1118, %v971
        %v1136 = vadd.f32 %v1118, %v974
        %v1137 = vadd.f32 %v1118, %v977
        %v1138 = vadd.f32 %v1118, %v980
        %v1139 = vadd.f32 %v1118, %v983
        %v1140 = vadd.f32 %v1118, %v986
        %v1141 = vadd.f32 %v1118, %v989
        %v1142 = vadd.f32 %v1118, %v992
        %v1143 = vadd.f32 %v1118, %v995
        %v1144 = vadd.f32 %v1118, %v998
        %v1145 = vadd.f32 %v1118, %v1001
        %v1146 = vadd.f32 %v1118, %v1004
        %v1147 = vadd.f32 %v1118, %v1007
        %v1148 = vadd.f32 %v1118, %v1010
        %v1149 = vadd.f32 %v1118, %v1013
        %v1150 = vadd.f32 %v1118, %v1016
        %v1151 = vadd.f32 %v1118, %v1019
        %v1152 = vadd.f32 %v1118, %v1022
        %v1153 = vadd.f32 %v1118, %v1025
        %v1154 = vadd.f32 %v1118, %v1028
        %v1155 = vadd.f32 %v1118, %v1031
        %v1156 = vadd.f32 %v1118, %v1034
        %v1157 = vadd.f32 %v1118, %v1037
        %v1158 = vadd.f32 %v1118, %v1040
        %v1159 = vadd.f32 %v1118, %v1043
        %v1160 = vadd.f32 %v1118, %v1046
        %v1161 = vadd.f32 %v1118, %v1049
        %v1162 = vadd.f32 %v1118, %v1052
        %v1163 = vadd.f32 %v1118, %v1055
        %v1164 = vadd.f32 %v1118, %v1058
        %v1165 = vadd.f32 %v1118, %v1061
        %v1166 = vadd.f32 %v1118, %v1064
        %v1167 = vadd.f32 %v1118, %v1067
        %v1168 = vadd.f32 %v1118, %v1070
        %v1169 = vadd.f32 %v1118, %v1073
        %v1170 = vadd.f32 %v1118, %v1076
        %v1171 = vadd.f32 %v1118, %v1079
        %v1172 = vadd.f32 %v1118, %v1082
        %v1173 = vadd.f32 %v1118, %v1085
        %v1174 = vadd.f32 %v1118, %v1088
        %v1175 = vadd.f32 %v1118, %v1091
        %v1176 = vadd.f32 %v1118, %v1094
        %v1177 = vadd.f32 %v1118, %v1097
        %v1178 = vadd.f32 %v1118, %v1100
        %v1179 = vadd.f32 %v1118, %v1103
        %v1180 = vadd.f32 %v1118, %v1106
        %v1181 = vadd.f32 %v1118, %v1109
        %v1182 = vadd.f32 %v1118, %v1112
        %v1183 = vadd.f32 %v1118, %v1115
        %v1184 = vld [vmem:[%s303] sm:$0xff]
        %v1185 = vld [vmem:[%s303 + $0x8] sm:$0xff]
        %v1186 = vld [vmem:[%s303 + $0x10] sm:$0xff]
        %v1187 = vld [vmem:[%s303 + $0x18] sm:$0xff]
        %v1188 = vld [vmem:[%s303 + $0x20] sm:$0xff]
        %v1189 = vld [vmem:[%s303 + $0x28] sm:$0xff]
        %v1190 = vld [vmem:[%s303 + $0x30] sm:$0xff]
        %v1191 = vld [vmem:[%s303 + $0x38] sm:$0xff]
        %v1192 = vld [vmem:[%s303 + $0x40] sm:$0xff]
        %v1193 = vld [vmem:[%s303 + $0x48] sm:$0xff]
        %v1194 = vld [vmem:[%s303 + $0x50] sm:$0xff]
        %v1195 = vld [vmem:[%s303 + $0x58] sm:$0xff]
        %v1196 = vld [vmem:[%s303 + $0x60] sm:$0xff]
        %v1197 = vld [vmem:[%s303 + $0x68] sm:$0xff]
        %v1198 = vld [vmem:[%s303 + $0x70] sm:$0xff]
        %v1199 = vld [vmem:[%s303 + $0x78] sm:$0xff]
        %v1200 = vld [vmem:[%s303 + $0x80] sm:$0xff]
        %v1201 = vld [vmem:[%s303 + $0x88] sm:$0xff]
        %v1202 = vld [vmem:[%s303 + $0x90] sm:$0xff]
        %v1203 = vld [vmem:[%s303 + $0x98] sm:$0xff]
        %v1204 = vld [vmem:[%s303 + $0xa0] sm:$0xff]
        %v1205 = vld [vmem:[%s303 + $0xa8] sm:$0xff]
        %v1206 = vld [vmem:[%s303 + $0xb0] sm:$0xff]
        %v1207 = vld [vmem:[%s303 + $0xb8] sm:$0xff]
        %v1208 = vld [vmem:[%s303 + $0xc0] sm:$0xff]
        %v1209 = vld [vmem:[%s303 + $0xc8] sm:$0xff]
        %v1210 = vld [vmem:[%s303 + $0xd0] sm:$0xff]
        %v1211 = vld [vmem:[%s303 + $0xd8] sm:$0xff]
        %v1212 = vld [vmem:[%s303 + $0xe0] sm:$0xff]
        %v1213 = vld [vmem:[%s303 + $0xe8] sm:$0xff]
        %v1214 = vld [vmem:[%s303 + $0xf0] sm:$0xff]
        %v1215 = vld [vmem:[%s303 + $0xf8] sm:$0xff]
        %v1216 = vld [vmem:[%s303 + $0x100] sm:$0xff]
        %v1217 = vld [vmem:[%s303 + $0x108] sm:$0xff]
        %v1218 = vld [vmem:[%s303 + $0x110] sm:$0xff]
        %v1219 = vld [vmem:[%s303 + $0x118] sm:$0xff]
        %v1220 = vld [vmem:[%s303 + $0x120] sm:$0xff]
        %v1221 = vld [vmem:[%s303 + $0x128] sm:$0xff]
        %v1222 = vld [vmem:[%s303 + $0x130] sm:$0xff]
        %v1223 = vld [vmem:[%s303 + $0x138] sm:$0xff]
        %v1224 = vld [vmem:[%s303 + $0x140] sm:$0xff]
        %v1225 = vld [vmem:[%s303 + $0x148] sm:$0xff]
        %v1226 = vld [vmem:[%s303 + $0x150] sm:$0xff]
        %v1227 = vld [vmem:[%s303 + $0x158] sm:$0xff]
        %v1228 = vld [vmem:[%s303 + $0x160] sm:$0xff]
        %v1229 = vld [vmem:[%s303 + $0x168] sm:$0xff]
        %v1230 = vld [vmem:[%s303 + $0x170] sm:$0xff]
        %v1231 = vld [vmem:[%s303 + $0x178] sm:$0xff]
        %v1232 = vld [vmem:[%s303 + $0x180] sm:$0xff]
        %v1233 = vld [vmem:[%s303 + $0x188] sm:$0xff]
        %v1234 = vld [vmem:[%s303 + $0x190] sm:$0xff]
        %v1235 = vld [vmem:[%s303 + $0x198] sm:$0xff]
        %v1236 = vld [vmem:[%s303 + $0x1a0] sm:$0xff]
        %v1237 = vld [vmem:[%s303 + $0x1a8] sm:$0xff]
        %v1238 = vld [vmem:[%s303 + $0x1b0] sm:$0xff]
        %v1239 = vld [vmem:[%s303 + $0x1b8] sm:$0xff]
        %v1240 = vld [vmem:[%s303 + $0x1c0] sm:$0xff]
        %v1241 = vld [vmem:[%s303 + $0x1c8] sm:$0xff]
        %v1242 = vld [vmem:[%s303 + $0x1d0] sm:$0xff]
        %v1243 = vld [vmem:[%s303 + $0x1d8] sm:$0xff]
        %v1244 = vld [vmem:[%s303 + $0x1e0] sm:$0xff]
        %v1245 = vld [vmem:[%s303 + $0x1e8] sm:$0xff]
        %v1246 = vld [vmem:[%s303 + $0x1f0] sm:$0xff]
        %v1247 = vld [vmem:[%s303 + $0x1f8] sm:$0xff]
        %v1248 = vld [vmem:[%s313] sm:$0xff]
        %v1249 = vld [vmem:[%s313 + $0x8] sm:$0xff]
        %v1250 = vld [vmem:[%s313 + $0x10] sm:$0xff]
        %v1251 = vld [vmem:[%s313 + $0x18] sm:$0xff]
        %v1252 = vld [vmem:[%s313 + $0x20] sm:$0xff]
        %v1253 = vld [vmem:[%s313 + $0x28] sm:$0xff]
        %v1254 = vld [vmem:[%s313 + $0x30] sm:$0xff]
        %v1255 = vld [vmem:[%s313 + $0x38] sm:$0xff]
        %v1256 = vld [vmem:[%s313 + $0x40] sm:$0xff]
        %v1257 = vld [vmem:[%s313 + $0x48] sm:$0xff]
        %v1258 = vld [vmem:[%s313 + $0x50] sm:$0xff]
        %v1259 = vld [vmem:[%s313 + $0x58] sm:$0xff]
        %v1260 = vld [vmem:[%s313 + $0x60] sm:$0xff]
        %v1261 = vld [vmem:[%s313 + $0x68] sm:$0xff]
        %v1262 = vld [vmem:[%s313 + $0x70] sm:$0xff]
        %v1263 = vld [vmem:[%s313 + $0x78] sm:$0xff]
        %v1264 = vld [vmem:[%s313 + $0x80] sm:$0xff]
        %v1265 = vld [vmem:[%s313 + $0x88] sm:$0xff]
        %v1266 = vld [vmem:[%s313 + $0x90] sm:$0xff]
        %v1267 = vld [vmem:[%s313 + $0x98] sm:$0xff]
        %v1268 = vld [vmem:[%s313 + $0xa0] sm:$0xff]
        %v1269 = vld [vmem:[%s313 + $0xa8] sm:$0xff]
        %v1270 = vld [vmem:[%s313 + $0xb0] sm:$0xff]
        %v1271 = vld [vmem:[%s313 + $0xb8] sm:$0xff]
        %v1272 = vld [vmem:[%s313 + $0xc0] sm:$0xff]
        %v1273 = vld [vmem:[%s313 + $0xc8] sm:$0xff]
        %v1274 = vld [vmem:[%s313 + $0xd0] sm:$0xff]
        %v1275 = vld [vmem:[%s313 + $0xd8] sm:$0xff]
        %v1276 = vld [vmem:[%s313 + $0xe0] sm:$0xff]
        %v1277 = vld [vmem:[%s313 + $0xe8] sm:$0xff]
        %v1278 = vld [vmem:[%s313 + $0xf0] sm:$0xff]
        %v1279 = vld [vmem:[%s313 + $0xf8] sm:$0xff]
        %v1280 = vld [vmem:[%s313 + $0x100] sm:$0xff]
        %v1281 = vld [vmem:[%s313 + $0x108] sm:$0xff]
        %v1282 = vld [vmem:[%s313 + $0x110] sm:$0xff]
        %v1283 = vld [vmem:[%s313 + $0x118] sm:$0xff]
        %v1284 = vld [vmem:[%s313 + $0x120] sm:$0xff]
        %v1285 = vld [vmem:[%s313 + $0x128] sm:$0xff]
        %v1286 = vld [vmem:[%s313 + $0x130] sm:$0xff]
        %v1287 = vld [vmem:[%s313 + $0x138] sm:$0xff]
        %v1288 = vld [vmem:[%s313 + $0x140] sm:$0xff]
        %v1289 = vld [vmem:[%s313 + $0x148] sm:$0xff]
        %v1290 = vld [vmem:[%s313 + $0x150] sm:$0xff]
        %v1291 = vld [vmem:[%s313 + $0x158] sm:$0xff]
        %v1292 = vld [vmem:[%s313 + $0x160] sm:$0xff]
        %v1293 = vld [vmem:[%s313 + $0x168] sm:$0xff]
        %v1294 = vld [vmem:[%s313 + $0x170] sm:$0xff]
        %v1295 = vld [vmem:[%s313 + $0x178] sm:$0xff]
        %v1296 = vld [vmem:[%s313 + $0x180] sm:$0xff]
        %v1297 = vld [vmem:[%s313 + $0x188] sm:$0xff]
        %v1298 = vld [vmem:[%s313 + $0x190] sm:$0xff]
        %v1299 = vld [vmem:[%s313 + $0x198] sm:$0xff]
        %v1300 = vld [vmem:[%s313 + $0x1a0] sm:$0xff]
        %v1301 = vld [vmem:[%s313 + $0x1a8] sm:$0xff]
        %v1302 = vld [vmem:[%s313 + $0x1b0] sm:$0xff]
        %v1303 = vld [vmem:[%s313 + $0x1b8] sm:$0xff]
        %v1304 = vld [vmem:[%s313 + $0x1c0] sm:$0xff]
        %v1305 = vld [vmem:[%s313 + $0x1c8] sm:$0xff]
        %v1306 = vld [vmem:[%s313 + $0x1d0] sm:$0xff]
        %v1307 = vld [vmem:[%s313 + $0x1d8] sm:$0xff]
        %v1308 = vld [vmem:[%s313 + $0x1e0] sm:$0xff]
        %v1309 = vld [vmem:[%s313 + $0x1e8] sm:$0xff]
        %v1310 = vld [vmem:[%s313 + $0x1f0] sm:$0xff]
        %v1311 = vld [vmem:[%s313 + $0x1f8] sm:$0xff]
        %v1312 = vsub.f32 %v1248, %v1184
        %v1313 = vsub.f32 %v1249, %v1185
        %v1314 = vsub.f32 %v1250, %v1186
        %v1315 = vsub.f32 %v1251, %v1187
        %v1316 = vsub.f32 %v1252, %v1188
        %v1317 = vsub.f32 %v1253, %v1189
        %v1318 = vsub.f32 %v1254, %v1190
        %v1319 = vsub.f32 %v1255, %v1191
        %v1320 = vsub.f32 %v1256, %v1192
        %v1321 = vsub.f32 %v1257, %v1193
        %v1322 = vsub.f32 %v1258, %v1194
        %v1323 = vsub.f32 %v1259, %v1195
        %v1324 = vsub.f32 %v1260, %v1196
        %v1325 = vsub.f32 %v1261, %v1197
        %v1326 = vsub.f32 %v1262, %v1198
        %v1327 = vsub.f32 %v1263, %v1199
        %v1328 = vsub.f32 %v1264, %v1200
        %v1329 = vsub.f32 %v1265, %v1201
        %v1330 = vsub.f32 %v1266, %v1202
        %v1331 = vsub.f32 %v1267, %v1203
        %v1332 = vsub.f32 %v1268, %v1204
        %v1333 = vsub.f32 %v1269, %v1205
        %v1334 = vsub.f32 %v1270, %v1206
        %v1335 = vsub.f32 %v1271, %v1207
        %v1336 = vsub.f32 %v1272, %v1208
        %v1337 = vsub.f32 %v1273, %v1209
        %v1338 = vsub.f32 %v1274, %v1210
        %v1339 = vsub.f32 %v1275, %v1211
        %v1340 = vsub.f32 %v1276, %v1212
        %v1341 = vsub.f32 %v1277, %v1213
        %v1342 = vsub.f32 %v1278, %v1214
        %v1343 = vsub.f32 %v1279, %v1215
        %v1344 = vsub.f32 %v1280, %v1216
        %v1345 = vsub.f32 %v1281, %v1217
        %v1346 = vsub.f32 %v1282, %v1218
        %v1347 = vsub.f32 %v1283, %v1219
        %v1348 = vsub.f32 %v1284, %v1220
        %v1349 = vsub.f32 %v1285, %v1221
        %v1350 = vsub.f32 %v1286, %v1222
        %v1351 = vsub.f32 %v1287, %v1223
        %v1352 = vsub.f32 %v1288, %v1224
        %v1353 = vsub.f32 %v1289, %v1225
        %v1354 = vsub.f32 %v1290, %v1226
        %v1355 = vsub.f32 %v1291, %v1227
        %v1356 = vsub.f32 %v1292, %v1228
        %v1357 = vsub.f32 %v1293, %v1229
        %v1358 = vsub.f32 %v1294, %v1230
        %v1359 = vsub.f32 %v1295, %v1231
        %v1360 = vsub.f32 %v1296, %v1232
        %v1361 = vsub.f32 %v1297, %v1233
        %v1362 = vsub.f32 %v1298, %v1234
        %v1363 = vsub.f32 %v1299, %v1235
        %v1364 = vsub.f32 %v1300, %v1236
        %v1365 = vsub.f32 %v1301, %v1237
        %v1366 = vsub.f32 %v1302, %v1238
        %v1367 = vsub.f32 %v1303, %v1239
        %v1368 = vsub.f32 %v1304, %v1240
        %v1369 = vsub.f32 %v1305, %v1241
        %v1370 = vsub.f32 %v1306, %v1242
        %v1371 = vsub.f32 %v1307, %v1243
        %v1372 = vsub.f32 %v1308, %v1244
        %v1373 = vsub.f32 %v1309, %v1245
        %v1374 = vsub.f32 %v1310, %v1246
        %v1375 = vsub.f32 %v1311, %v1247
        %v1376 = vmul.f32 %v1120, %v1312
        %v1377 = vmul.f32 %v1121, %v1313
        %v1378 = vmul.f32 %v1122, %v1314
        %v1379 = vmul.f32 %v1123, %v1315
        %v1380 = vmul.f32 %v1124, %v1316
        %v1381 = vmul.f32 %v1125, %v1317
        %v1382 = vmul.f32 %v1126, %v1318
        %v1383 = vmul.f32 %v1127, %v1319
        %v1384 = vmul.f32 %v1128, %v1320
        %v1385 = vmul.f32 %v1129, %v1321
        %v1386 = vmul.f32 %v1130, %v1322
        %v1387 = vmul.f32 %v1131, %v1323
        %v1388 = vmul.f32 %v1132, %v1324
        %v1389 = vmul.f32 %v1133, %v1325
        %v1390 = vmul.f32 %v1134, %v1326
        %v1391 = vmul.f32 %v1135, %v1327
        %v1392 = vmul.f32 %v1136, %v1328
        %v1393 = vmul.f32 %v1137, %v1329
        %v1394 = vmul.f32 %v1138, %v1330
        %v1395 = vmul.f32 %v1139, %v1331
        %v1396 = vmul.f32 %v1140, %v1332
        %v1397 = vmul.f32 %v1141, %v1333
        %v1398 = vmul.f32 %v1142, %v1334
        %v1399 = vmul.f32 %v1143, %v1335
        %v1400 = vmul.f32 %v1144, %v1336
        %v1401 = vmul.f32 %v1145, %v1337
        %v1402 = vmul.f32 %v1146, %v1338
        %v1403 = vmul.f32 %v1147, %v1339
        %v1404 = vmul.f32 %v1148, %v1340
        %v1405 = vmul.f32 %v1149, %v1341
        %v1406 = vmul.f32 %v1150, %v1342
        %v1407 = vmul.f32 %v1151, %v1343
        %v1408 = vmul.f32 %v1152, %v1344
        %v1409 = vmul.f32 %v1153, %v1345
        %v1410 = vmul.f32 %v1154, %v1346
        %v1411 = vmul.f32 %v1155, %v1347
        %v1412 = vmul.f32 %v1156, %v1348
        %v1413 = vmul.f32 %v1157, %v1349
        %v1414 = vmul.f32 %v1158, %v1350
        %v1415 = vmul.f32 %v1159, %v1351
        %v1416 = vmul.f32 %v1160, %v1352
        %v1417 = vmul.f32 %v1161, %v1353
        %v1418 = vmul.f32 %v1162, %v1354
        %v1419 = vmul.f32 %v1163, %v1355
        %v1420 = vmul.f32 %v1164, %v1356
        %v1421 = vmul.f32 %v1165, %v1357
        %v1422 = vmul.f32 %v1166, %v1358
        %v1423 = vmul.f32 %v1167, %v1359
        %v1424 = vmul.f32 %v1168, %v1360
        %v1425 = vmul.f32 %v1169, %v1361
        %v1426 = vmul.f32 %v1170, %v1362
        %v1427 = vmul.f32 %v1171, %v1363
        %v1428 = vmul.f32 %v1172, %v1364
        %v1429 = vmul.f32 %v1173, %v1365
        %v1430 = vmul.f32 %v1174, %v1366
        %v1431 = vmul.f32 %v1175, %v1367
        %v1432 = vmul.f32 %v1176, %v1368
        %v1433 = vmul.f32 %v1177, %v1369
        %v1434 = vmul.f32 %v1178, %v1370
        %v1435 = vmul.f32 %v1179, %v1371
        %v1436 = vmul.f32 %v1180, %v1372
        %v1437 = vmul.f32 %v1181, %v1373
        %v1438 = vmul.f32 %v1182, %v1374
        %v1439 = vmul.f32 %v1183, %v1375
        %v1440 = vadd.f32 %v1184, %v1376
        %v1441 = vadd.f32 %v1185, %v1377
        %v1442 = vadd.f32 %v1186, %v1378
        %v1443 = vadd.f32 %v1187, %v1379
        %v1444 = vadd.f32 %v1188, %v1380
        %v1445 = vadd.f32 %v1189, %v1381
        %v1446 = vadd.f32 %v1190, %v1382
        %v1447 = vadd.f32 %v1191, %v1383
        %v1448 = vadd.f32 %v1192, %v1384
        %v1449 = vadd.f32 %v1193, %v1385
        %v1450 = vadd.f32 %v1194, %v1386
        %v1451 = vadd.f32 %v1195, %v1387
        %v1452 = vadd.f32 %v1196, %v1388
        %v1453 = vadd.f32 %v1197, %v1389
        %v1454 = vadd.f32 %v1198, %v1390
        %v1455 = vadd.f32 %v1199, %v1391
        %v1456 = vadd.f32 %v1200, %v1392
        %v1457 = vadd.f32 %v1201, %v1393
        %v1458 = vadd.f32 %v1202, %v1394
        %v1459 = vadd.f32 %v1203, %v1395
        %v1460 = vadd.f32 %v1204, %v1396
        %v1461 = vadd.f32 %v1205, %v1397
        %v1462 = vadd.f32 %v1206, %v1398
        %v1463 = vadd.f32 %v1207, %v1399
        %v1464 = vadd.f32 %v1208, %v1400
        %v1465 = vadd.f32 %v1209, %v1401
        %v1466 = vadd.f32 %v1210, %v1402
        %v1467 = vadd.f32 %v1211, %v1403
        %v1468 = vadd.f32 %v1212, %v1404
        %v1469 = vadd.f32 %v1213, %v1405
        %v1470 = vadd.f32 %v1214, %v1406
        %v1471 = vadd.f32 %v1215, %v1407
        %v1472 = vadd.f32 %v1216, %v1408
        %v1473 = vadd.f32 %v1217, %v1409
        %v1474 = vadd.f32 %v1218, %v1410
        %v1475 = vadd.f32 %v1219, %v1411
        %v1476 = vadd.f32 %v1220, %v1412
        %v1477 = vadd.f32 %v1221, %v1413
        %v1478 = vadd.f32 %v1222, %v1414
        %v1479 = vadd.f32 %v1223, %v1415
        %v1480 = vadd.f32 %v1224, %v1416
        %v1481 = vadd.f32 %v1225, %v1417
        %v1482 = vadd.f32 %v1226, %v1418
        %v1483 = vadd.f32 %v1227, %v1419
        %v1484 = vadd.f32 %v1228, %v1420
        %v1485 = vadd.f32 %v1229, %v1421
        %v1486 = vadd.f32 %v1230, %v1422
        %v1487 = vadd.f32 %v1231, %v1423
        %v1488 = vadd.f32 %v1232, %v1424
        %v1489 = vadd.f32 %v1233, %v1425
        %v1490 = vadd.f32 %v1234, %v1426
        %v1491 = vadd.f32 %v1235, %v1427
        %v1492 = vadd.f32 %v1236, %v1428
        %v1493 = vadd.f32 %v1237, %v1429
        %v1494 = vadd.f32 %v1238, %v1430
        %v1495 = vadd.f32 %v1239, %v1431
        %v1496 = vadd.f32 %v1240, %v1432
        %v1497 = vadd.f32 %v1241, %v1433
        %v1498 = vadd.f32 %v1242, %v1434
        %v1499 = vadd.f32 %v1243, %v1435
        %v1500 = vadd.f32 %v1244, %v1436
        %v1501 = vadd.f32 %v1245, %v1437
        %v1502 = vadd.f32 %v1246, %v1438
        %v1503 = vadd.f32 %v1247, %v1439
        %1504 = vst [vmem:[%s352] sm:$0xff] %v1440
        %1505 = vst [vmem:[%s352 + $0x8] sm:$0xff] %v1441
        %1506 = vst [vmem:[%s352 + $0x10] sm:$0xff] %v1442
        %1507 = vst [vmem:[%s352 + $0x18] sm:$0xff] %v1443
        %1508 = vst [vmem:[%s352 + $0x20] sm:$0xff] %v1444
        %1509 = vst [vmem:[%s352 + $0x28] sm:$0xff] %v1445
        %1510 = vst [vmem:[%s352 + $0x30] sm:$0xff] %v1446
        %1511 = vst [vmem:[%s352 + $0x38] sm:$0xff] %v1447
        %1512 = vst [vmem:[%s352 + $0x40] sm:$0xff] %v1448
        %1513 = vst [vmem:[%s352 + $0x48] sm:$0xff] %v1449
        %1514 = vst [vmem:[%s352 + $0x50] sm:$0xff] %v1450
        %1515 = vst [vmem:[%s352 + $0x58] sm:$0xff] %v1451
        %1516 = vst [vmem:[%s352 + $0x60] sm:$0xff] %v1452
        %1517 = vst [vmem:[%s352 + $0x68] sm:$0xff] %v1453
        %1518 = vst [vmem:[%s352 + $0x70] sm:$0xff] %v1454
        %1519 = vst [vmem:[%s352 + $0x78] sm:$0xff] %v1455
        %1520 = vst [vmem:[%s352 + $0x80] sm:$0xff] %v1456
        %1521 = vst [vmem:[%s352 + $0x88] sm:$0xff] %v1457
        %1522 = vst [vmem:[%s352 + $0x90] sm:$0xff] %v1458
        %1523 = vst [vmem:[%s352 + $0x98] sm:$0xff] %v1459
        %1524 = vst [vmem:[%s352 + $0xa0] sm:$0xff] %v1460
        %1525 = vst [vmem:[%s352 + $0xa8] sm:$0xff] %v1461
        %1526 = vst [vmem:[%s352 + $0xb0] sm:$0xff] %v1462
        %1527 = vst [vmem:[%s352 + $0xb8] sm:$0xff] %v1463
        %1528 = vst [vmem:[%s352 + $0xc0] sm:$0xff] %v1464
        %1529 = vst [vmem:[%s352 + $0xc8] sm:$0xff] %v1465
        %1530 = vst [vmem:[%s352 + $0xd0] sm:$0xff] %v1466
        %1531 = vst [vmem:[%s352 + $0xd8] sm:$0xff] %v1467
        %1532 = vst [vmem:[%s352 + $0xe0] sm:$0xff] %v1468
        %1533 = vst [vmem:[%s352 + $0xe8] sm:$0xff] %v1469
        %1534 = vst [vmem:[%s352 + $0xf0] sm:$0xff] %v1470
        %1535 = vst [vmem:[%s352 + $0xf8] sm:$0xff] %v1471
        %1536 = vst [vmem:[%s352 + $0x100] sm:$0xff] %v1472
        %1537 = vst [vmem:[%s352 + $0x108] sm:$0xff] %v1473
        %1538 = vst [vmem:[%s352 + $0x110] sm:$0xff] %v1474
        %1539 = vst [vmem:[%s352 + $0x118] sm:$0xff] %v1475
        %1540 = vst [vmem:[%s352 + $0x120] sm:$0xff] %v1476
        %1541 = vst [vmem:[%s352 + $0x128] sm:$0xff] %v1477
        %1542 = vst [vmem:[%s352 + $0x130] sm:$0xff] %v1478
        %1543 = vst [vmem:[%s352 + $0x138] sm:$0xff] %v1479
        %1544 = vst [vmem:[%s352 + $0x140] sm:$0xff] %v1480
        %1545 = vst [vmem:[%s352 + $0x148] sm:$0xff] %v1481
        %1546 = vst [vmem:[%s352 + $0x150] sm:$0xff] %v1482
        %1547 = vst [vmem:[%s352 + $0x158] sm:$0xff] %v1483
        %1548 = vst [vmem:[%s352 + $0x160] sm:$0xff] %v1484
        %1549 = vst [vmem:[%s352 + $0x168] sm:$0xff] %v1485
        %1550 = vst [vmem:[%s352 + $0x170] sm:$0xff] %v1486
        %1551 = vst [vmem:[%s352 + $0x178] sm:$0xff] %v1487
        %1552 = vst [vmem:[%s352 + $0x180] sm:$0xff] %v1488
        %1553 = vst [vmem:[%s352 + $0x188] sm:$0xff] %v1489
        %1554 = vst [vmem:[%s352 + $0x190] sm:$0xff] %v1490
        %1555 = vst [vmem:[%s352 + $0x198] sm:$0xff] %v1491
        %1556 = vst [vmem:[%s352 + $0x1a0] sm:$0xff] %v1492
        %1557 = vst [vmem:[%s352 + $0x1a8] sm:$0xff] %v1493
        %1558 = vst [vmem:[%s352 + $0x1b0] sm:$0xff] %v1494
        %1559 = vst [vmem:[%s352 + $0x1b8] sm:$0xff] %v1495
        %1560 = vst [vmem:[%s352 + $0x1c0] sm:$0xff] %v1496
        %1561 = vst [vmem:[%s352 + $0x1c8] sm:$0xff] %v1497
        %1562 = vst [vmem:[%s352 + $0x1d0] sm:$0xff] %v1498
        %1563 = vst [vmem:[%s352 + $0x1d8] sm:$0xff] %v1499
        %1564 = vst [vmem:[%s352 + $0x1e0] sm:$0xff] %v1500
        %1565 = vst [vmem:[%s352 + $0x1e8] sm:$0xff] %v1501
        %1566 = vst [vmem:[%s352 + $0x1f0] sm:$0xff] %v1502
        %1567 = vst [vmem:[%s352 + $0x1f8] sm:$0xff] %v1503
        %s1568 = sand.u32 %s175, 1
        %s1569 = scalar_lea.sflag [#allocation4], %s1568
        %s1570 = sand.u32 %s175, 1
        %s1571 = smul.addr %s1570, 512
        %s1572 = scalar_lea.vmem [#allocation8], %s1571
        // Predicated region
        $region57: #{ddlerp_pallas.1} parent=43 // pred_check
          %p1573 = pneg %p185
        $region58: #{ddlerp_pallas.1} parent=43 // pred_check_branch
          %1575 = sbr.rel (%p1573) target = $region60
        $region59: #{ddlerp_pallas.1} parent=43 // pred_region
          %s1576 = smul.u32 64, %s26
          %1578 = vsyncadd %s1569, 0
          %s1579 = smul.addr %s1576, 8
          %s1580 = scalar_lea.hbm %s6, %s1579
          %s1581 = sshll.u32 %s1572, 4
          %s1582 = int_to_ptr.vmem [resolvable:$true] %s1581
          %s1583 = sshll.u32 %s1580, 4
          %s1584 = int_to_ptr.hbm [resolvable:$true] %s1583
          %1589 = dma.vmem_to_hbm [thread:$0]  %s1582, 8192, %s1584, %s1569, 128, 128, 8
        $region60: #{ddlerp_pallas.1} parent=43 // pred_fallthru
          _
      $region44: #{ddlerp_pallas.1} parent=5 // pred_fallthru
        _
      %p1590 = scmp.le.s32.totalorder 2, %s21
      // Predicated region
      $region61: #{ddlerp_pallas.1} parent=5 // pred_check
        %p1591 = pneg %p1590
      $region62: #{ddlerp_pallas.1} parent=5 // pred_check_branch
        %1593 = sbr.rel (%p1591) target = $region64
      $region63: #{ddlerp_pallas.1} parent=5 // pred_region
        %s1594 = ssub.s32 %s21, 2
        // Predicated region
        $region65: #{ddlerp_pallas.1} parent=63 // pred_check
          %p1595 = pneg %p191
        $region66: #{ddlerp_pallas.1} parent=63 // pred_check_branch
          %1597 = sbr.rel (%p1595) target = $region68
        $region67: #{ddlerp_pallas.1} parent=63 // pred_region
          %s1598 = sand.u32 %s176, 1
          %s1599 = scalar_lea.sflag [#allocation4], %s1598
          %s1600 = sand.u32 %s176, 1
          %s1601 = smul.addr %s1600, 512
          %s1602 = scalar_lea.vmem [#allocation8], %s1601
          %1604 = dma.done %s1599, 8192
        $region68: #{ddlerp_pallas.1} parent=63 // pred_fallthru
          _
      $region64: #{ddlerp_pallas.1} parent=5 // pred_fallthru
        _
    $region6: #{ddlerp_pallas.1} parent=1 // loop_footer
      %s25 = sadd.s32 1, %s21
    $region7: #{ddlerp_pallas.1} parent=1 // loop_footer_branch
      %20 = sbr.rel target = $region3
    $region8: #{ddlerp_pallas.1} parent=1 // loop_exit
      _
    %1605 = vsyncpa [#allocation3], 1
    %s1606 = scalar_lea.sflag [#allocation3], 1
    %1607 = vsyncpa %s1606, 1
    %1608 = vsyncpa [#allocation6], 1
    %s1609 = scalar_lea.sflag [#allocation6], 1
    %1610 = vsyncpa %s1609, 1
    %1611 = vsyncpa [#allocation4], 1
    %s1612 = scalar_lea.sflag [#allocation4], 1
    %1613 = vsyncpa %s1612, 1

</llo_original>
